<compile_context>
chip_gen: v7x
topology: tpu7x:2x2x1
jax: 0.10.0
libtpu: 0.0.40
codegen_flags: <defaults>
</compile_context>

<pallas_src>
import jax
import jax.numpy as jnp
from jax import lax
from jax.experimental import pallas as pl
from jax.experimental.pallas import tpu as pltpu

C1 = 32          # conv1 output channels (fixed by the module)
C2 = 64          # conv2 output channels (fixed by the module)
BN_EPS = 1e-5


def _round_up(x, m):
    return ((x + m - 1) // m) * m


def _make_kernel(TC, F, pad_rows):
    """TC: valid time rows per chunk (multiple of 8); F: freq bins;
    pad_rows: number of padded (invalid) rows at the end of the last chunk."""

    def kernel(x_ref, w1_ref, b1_ref, w2_ref, b2_ref, wp_ref, bp_ref,
               out_ref, h1_ref):
        # x_ref:  (1, 1, TC+4, F+2) f32   zero-padded chunk (2-row time halo, 1-col freq halo)
        # out_ref:(1, TC, out_dim) f32
        # h1_ref: (TC+2, F+2, C1)  bf16   freq-padded conv1 activations for this chunk
        c = pl.program_id(1)
        xc = x_ref[0, 0, :, :]                                # (TC+4, F+2)

        # ---- Conv2d(1->32, 3x3, pad 1) + BN1 + ReLU: tiny im2col matmul on the MXU ----
        # (BN1 scale and conv1 bias are folded into w1 / b1 on the host.)
        pieces = [xc[dy:dy + TC + 2, dx:dx + F][:, :, None]
                  for dy in range(3) for dx in range(3)]      # 9 x (TC+2, F, 1)
        xim = jnp.concatenate(pieces, axis=-1)                # (TC+2, F, 9)
        xim = xim.reshape((TC + 2) * F, 9)
        a1 = jnp.dot(xim, w1_ref[...], preferred_element_type=jnp.float32)
        h1 = jnp.maximum(a1 + b1_ref[...], 0.0).reshape(TC + 2, F, C1)

        # bf16 scratch: interior fully overwritten, 1-column freq halo zeroed each step.
        h1_ref[:, 1:F + 1, :] = h1.astype(h1_ref.dtype)
        h1_ref[:, 0:1, :] = jnp.zeros((TC + 2, 1, C1), h1_ref.dtype)
        h1_ref[:, F + 1:F + 2, :] = jnp.zeros((TC + 2, 1, C1), h1_ref.dtype)

        # Rows outside [0, T) act as conv2's zero padding -> force exact zeros.
        # Only the first and last time chunk can contain such rows (gated on program_id).
        @pl.when(c == 0)
        def _():
            h1_ref[0:1, :, :] = jnp.zeros((1, F + 2, C1), h1_ref.dtype)

        @pl.when(c == pl.num_programs(1) - 1)
        def _():
            h1_ref[TC + 1 - pad_rows:TC + 2, :, :] = jnp.zeros(
                (pad_rows + 1, F + 2, C1), h1_ref.dtype)

        # ---- Conv2d(32->64) + BN2 + ReLU + freq pool: one im2col MXU matmul ----
        # (BN2 scale and the 1/F pooling factor are folded into w2 / b2 on the host.)
        cols = [h1_ref[dy:dy + TC, dx:dx + F, :]
                for dy in range(3) for dx in range(3)]        # 9 x (TC, F, C1) bf16
        im2col = jnp.concatenate(cols, axis=-1).reshape(TC * F, 9 * C1)
        a2 = jnp.dot(im2col, w2_ref[...], preferred_element_type=jnp.float32)
        h2 = jnp.maximum(a2 + b2_ref[...], 0.0).reshape(TC, F, C2)
        pooled = jnp.sum(h2, axis=1)                          # (TC, C2), stays in regs

        # ---- Linear(64 -> out_dim) on the MXU ----
        y = jnp.dot(pooled, wp_ref[...], preferred_element_type=jnp.float32) + bp_ref[...]
        out_ref[0, :, :] = y.astype(out_ref.dtype)

    return kernel


def resnet_extractor_forward(x, params, *, tc=64):
    """x: (B, T, F) float32.  Returns (B, T, out_dim) float32."""
    B, T, F = x.shape
    w1, b1, w2, b2, wp, bp = params
    out_dim = wp.shape[1]

    tc = max(8, min(_round_up(tc, 8), _round_up(T, 8)))       # chunk rows, multiple of 8
    t_pad = _round_up(T, tc)
    nc = t_pad // tc
    pad_rows = t_pad - T

    # 2-row time halo each side, 1-col freq halo each side, then pre-chunk into
    # overlapping (tc+4)-row windows so every BlockSpec is a plain full-dim block.
    x_pad = jnp.pad(x, ((0, 0), (2, pad_rows + 2), (1, 1)))   # (B, t_pad+4, F+2)
    win = jnp.arange(nc)[:, None] * tc + jnp.arange(tc + 4)[None, :]
    x_chunks = x_pad[:, win, :]                               # (B, nc, tc+4, F+2)

    kernel = _make_kernel(tc, F, pad_rows)

    flops = (2 * B * t_pad * F * 9 * C1
             + 2 * B * t_pad * F * 9 * C1 * C2
             + 2 * B * t_pad * C2 * out_dim)
    bytes_accessed = (4 * int(x_chunks.size) + 4 * B * t_pad * out_dim
                      + 2 * int(w2.size)
                      + 4 * (int(w1.size) + int(b1.size) + int(b2.size)
                             + int(wp.size) + int(bp.size)))

    grid_spec = pltpu.PrefetchScalarGridSpec(
        num_scalar_prefetch=0,
        grid=(B, nc),
        in_specs=[
            pl.BlockSpec((1, 1, tc + 4, F + 2), lambda b, c: (b, c, 0, 0)),
            pl.BlockSpec((9, C1), lambda b, c: (0, 0)),
            pl.BlockSpec((1, C1), lambda b, c: (0, 0)),
            pl.BlockSpec((9 * C1, C2), lambda b, c: (0, 0)),
            pl.BlockSpec((1, C2), lambda b, c: (0, 0)),
            pl.BlockSpec((C2, out_dim), lambda b, c: (0, 0)),
            pl.BlockSpec((1, out_dim), lambda b, c: (0, 0)),
        ],
        out_specs=pl.BlockSpec((1, tc, out_dim), lambda b, c: (b, c, 0)),
        scratch_shapes=[pltpu.VMEM((tc + 2, F + 2, C1), jnp.bfloat16)],
    )
    out = pl.pallas_call(
        kernel,
        out_shape=jax.ShapeDtypeStruct((B, t_pad, out_dim), jnp.float32),
        grid_spec=grid_spec,
        compiler_params=pltpu.CompilerParams(
            dimension_semantics=("parallel", "parallel"),
            vmem_limit_bytes=40 * 1024 * 1024),
        cost_estimate=pl.CostEstimate(flops=flops, transcendentals=0,
                                      bytes_accessed=bytes_accessed),
    )(x_chunks, w1, b1, w2, b2, wp, bp)
    return out[:, :T, :]


# ------------------------- parameter setup (deterministic) -------------------------

def init_raw_params(key, out_dim):
    ks = jax.random.split(key, 16)
    p = {}
    p["conv1_w"] = 0.20 * jax.random.normal(ks[0], (C1, 1, 3, 3), jnp.float32)
    p["conv1_b"] = 0.10 * jax.random.normal(ks[1], (C1,), jnp.float32)
    p["bn1_g"] = 1.0 + 0.10 * jax.random.normal(ks[2], (C1,), jnp.float32)
    p["bn1_b"] = 0.10 * jax.random.normal(ks[3], (C1,), jnp.float32)
    p["bn1_m"] = 0.10 * jax.random.normal(ks[4], (C1,), jnp.float32)
    p["bn1_v"] = jax.random.uniform(ks[5], (C1,), jnp.float32, 0.5, 1.5)
    p["conv2_w"] = 0.08 * jax.random.normal(ks[6], (C2, C1, 3, 3), jnp.float32)
    p["conv2_b"] = 0.10 * jax.random.normal(ks[7], (C2,), jnp.float32)
    p["bn2_g"] = 1.0 + 0.10 * jax.random.normal(ks[8], (C2,), jnp.float32)
    p["bn2_b"] = 0.10 * jax.random.normal(ks[9], (C2,), jnp.float32)
    p["bn2_m"] = 0.10 * jax.random.normal(ks[10], (C2,), jnp.float32)
    p["bn2_v"] = jax.random.uniform(ks[11], (C2,), jnp.float32, 0.5, 1.5)
    p["proj_w"] = 0.10 * jax.random.normal(ks[12], (out_dim, C2), jnp.float32)
    p["proj_b"] = 0.10 * jax.random.normal(ks[13], (out_dim,), jnp.float32)
    return p


def fold_params(p, freq_dim):
    """Fold eval-mode BatchNorm (+ conv biases) and the 1/freq_dim pooling factor into
    the conv weights / biases; reorder conv weights tap-major for the im2col matmuls."""
    sc1 = p["bn1_g"] / jnp.sqrt(p["bn1_v"] + BN_EPS)
    sh1 = (p["conv1_b"] - p["bn1_m"]) * sc1 + p["bn1_b"]
    sc2 = p["bn2_g"] / jnp.sqrt(p["bn2_v"] + BN_EPS)
    sh2 = (p["conv2_b"] - p["bn2_m"]) * sc2 + p["bn2_b"]

    # conv1: (C1,1,3,3) -> (dy, dx, C1) taps, BN1 scale folded in.  f32 MXU operands.
    w1 = jnp.transpose(p["conv1_w"], (2, 3, 1, 0)).reshape(9, C1) * sc1[None, :]
    b1 = sh1[None, :]                                                 # (1, C1)

    # conv2: (C2,C1,3,3) -> (dy, dx, cin) major K ordering; BN2 scale and the 1/F
    # pooling factor folded in (ReLU commutes with the positive 1/F), bf16 MXU operands.
    w2 = jnp.transpose(p["conv2_w"], (2, 3, 1, 0)).reshape(9 * C1, C2)
    w2 = (w2 * (sc2 / freq_dim)[None, :]).astype(jnp.bfloat16)
    b2 = (sh2 / freq_dim)[None, :]                                    # (1, C2)

    wp = p["proj_w"].T                                                # (C2, out_dim)
    bp = p["proj_b"][None, :]                                         # (1, out_dim)
    return (w1, b1, w2, b2, wp, bp)


# ------------------------------ pure-JAX reference ---------------------------------

def reference_forward(x, p):
    dn = ("NCHW", "OIHW", "NCHW")
    h = x[:, None, :, :]
    h = lax.conv_general_dilated(h, p["conv1_w"], (1, 1), ((1, 1), (1, 1)),
                                 dimension_numbers=dn, precision=lax.Precision.HIGHEST)
    h = h + p["conv1_b"][None, :, None, None]
    s = p["bn1_g"] / jnp.sqrt(p["bn1_v"] + BN_EPS)
    h = (h - p["bn1_m"][None, :, None, None]) * s[None, :, None, None] \
        + p["bn1_b"][None, :, None, None]
    h = jnp.maximum(h, 0.0)
    h = lax.conv_general_dilated(h, p["conv2_w"], (1, 1), ((1, 1), (1, 1)),
                                 dimension_numbers=dn, precision=lax.Precision.HIGHEST)
    h = h + p["conv2_b"][None, :, None, None]
    s = p["bn2_g"] / jnp.sqrt(p["bn2_v"] + BN_EPS)
    h = (h - p["bn2_m"][None, :, None, None]) * s[None, :, None, None] \
        + p["bn2_b"][None, :, None, None]
    h = jnp.maximum(h, 0.0)
    h = jnp.mean(h, axis=3)                  # AdaptiveAvgPool2d((None, 1)) + squeeze(-1)
    h = jnp.transpose(h, (0, 2, 1))          # (B, T, 64)
    return h @ p["proj_w"].T + p["proj_b"][None, None, :]


if __name__ == "__main__":
    key = jax.random.PRNGKey(0)
    # Case 0: single chunk.  Case 1: multi-chunk path with T > tc and T % tc != 0
    # (exercises inter-chunk halos and the last-chunk row masking).
    cases = [
        dict(B=2, T=8, F=16, out_dim=32, tc=64),
        dict(B=2, T=40, F=16, out_dim=32, tc=16),
    ]
    for i, cfg in enumerate(cases):
        kx, kp, key = jax.random.split(key, 3)
        x = jax.random.normal(kx, (cfg["B"], cfg["T"], cfg["F"]), jnp.float32)
        raw = init_raw_params(kp, cfg["out_dim"])
        params = fold_params(raw, cfg["F"])

        y = resnet_extractor_forward(x, params, tc=cfg["tc"])
        y = jax.block_until_ready(y)
        assert y.shape == (cfg["B"], cfg["T"], cfg["out_dim"]), y.shape

        y_ref = reference_forward(x, raw)
        err = float(jnp.max(jnp.abs(y - y_ref)))
        # Tolerance relaxed vs an all-f32 version: conv2 uses bf16 MXU operands
        # (f32 accumulation); conv1 / projection stay in f32.
        if not bool(jnp.allclose(y, y_ref, atol=1e-2, rtol=1e-2)):
            raise AssertionError(
                f"case {i}: Pallas kernel mismatch vs JAX reference, max abs err = {err}")

    print("KERNEL_OK")
</pallas_src>

<mosaic_0001>
module attributes {stable_mosaic.version = 11 : i64} {
  func.func @kernel(%arg0: i32, %arg1: i32, %arg2: memref<1x1x12x18xf32, #tpu.memory_space<vmem>>, %arg3: memref<9x32xf32, #tpu.memory_space<vmem>>, %arg4: memref<1x32xf32, #tpu.memory_space<vmem>>, %arg5: memref<288x64xbf16, #tpu.memory_space<vmem>>, %arg6: memref<1x64xf32, #tpu.memory_space<vmem>>, %arg7: memref<64x32xf32, #tpu.memory_space<vmem>>, %arg8: memref<1x32xf32, #tpu.memory_space<vmem>>, %arg9: memref<1x8x32xf32, #tpu.memory_space<vmem>>, %arg10: memref<10x18x32xbf16, #tpu.memory_space<vmem>>) attributes {dimension_semantics = [#tpu.dimension_semantics<parallel>, #tpu.dimension_semantics<parallel>], iteration_bounds = array<i64: 2, 1>, scalar_prefetch = 0 : i64, scratch_operands = 1 : i64, tpu.core_type = #tpu.core_type<tc>, window_params = [{transform_indices = @transform_0, window_bounds = array<i64: 1, 1, 12, 18>}, {pipeline_mode = #tpu.pipeline_mode<synchronous>, transform_indices = @transform_1, window_bounds = array<i64: 9, 32>}, {pipeline_mode = #tpu.pipeline_mode<synchronous>, transform_indices = @transform_2, window_bounds = array<i64: 1, 32>}, {pipeline_mode = #tpu.pipeline_mode<synchronous>, transform_indices = @transform_3, window_bounds = array<i64: 288, 64>}, {pipeline_mode = #tpu.pipeline_mode<synchronous>, transform_indices = @transform_4, window_bounds = array<i64: 1, 64>}, {pipeline_mode = #tpu.pipeline_mode<synchronous>, transform_indices = @transform_5, window_bounds = array<i64: 64, 32>}, {pipeline_mode = #tpu.pipeline_mode<synchronous>, transform_indices = @transform_6, window_bounds = array<i64: 1, 32>}, {transform_indices = @transform_7, window_bounds = array<i64: 1, 8, 32>}]} {
    %c0 = arith.constant 0 : index
    %c0_0 = arith.constant 0 : index
    %c0_1 = arith.constant 0 : index
    %c0_2 = arith.constant 0 : index
    %0 = vector.load %arg2[%c0, %c0_0, %c0_1, %c0_2] : memref<1x1x12x18xf32, #tpu.memory_space<vmem>>, vector<1x1x12x18xf32>
    %1 = vector.shape_cast %0 : vector<1x1x12x18xf32> to vector<12x18xf32>
    %2 = vector.extract_strided_slice %1 {offsets = [0, 0], sizes = [10, 16], strides = [1, 1]} : vector<12x18xf32> to vector<10x16xf32>
    %3 = vector.shape_cast %2 : vector<10x16xf32> to vector<10x16x1xf32>
    %4 = vector.extract_strided_slice %1 {offsets = [0, 1], sizes = [10, 16], strides = [1, 1]} : vector<12x18xf32> to vector<10x16xf32>
    %5 = vector.shape_cast %4 : vector<10x16xf32> to vector<10x16x1xf32>
    %6 = vector.extract_strided_slice %1 {offsets = [0, 2], sizes = [10, 16], strides = [1, 1]} : vector<12x18xf32> to vector<10x16xf32>
    %7 = vector.shape_cast %6 : vector<10x16xf32> to vector<10x16x1xf32>
    %8 = vector.extract_strided_slice %1 {offsets = [1, 0], sizes = [10, 16], strides = [1, 1]} : vector<12x18xf32> to vector<10x16xf32>
    %9 = vector.shape_cast %8 : vector<10x16xf32> to vector<10x16x1xf32>
    %10 = vector.extract_strided_slice %1 {offsets = [1, 1], sizes = [10, 16], strides = [1, 1]} : vector<12x18xf32> to vector<10x16xf32>
    %11 = vector.shape_cast %10 : vector<10x16xf32> to vector<10x16x1xf32>
    %12 = vector.extract_strided_slice %1 {offsets = [1, 2], sizes = [10, 16], strides = [1, 1]} : vector<12x18xf32> to vector<10x16xf32>
    %13 = vector.shape_cast %12 : vector<10x16xf32> to vector<10x16x1xf32>
    %14 = vector.extract_strided_slice %1 {offsets = [2, 0], sizes = [10, 16], strides = [1, 1]} : vector<12x18xf32> to vector<10x16xf32>
    %15 = vector.shape_cast %14 : vector<10x16xf32> to vector<10x16x1xf32>
    %16 = vector.extract_strided_slice %1 {offsets = [2, 1], sizes = [10, 16], strides = [1, 1]} : vector<12x18xf32> to vector<10x16xf32>
    %17 = vector.shape_cast %16 : vector<10x16xf32> to vector<10x16x1xf32>
    %18 = vector.extract_strided_slice %1 {offsets = [2, 2], sizes = [10, 16], strides = [1, 1]} : vector<12x18xf32> to vector<10x16xf32>
    %19 = vector.shape_cast %18 : vector<10x16xf32> to vector<10x16x1xf32>
    %20 = tpu.concatenate %3, %5, %7, %9, %11, %13, %15, %17, %19 in 2 : vector<10x16x1xf32>, vector<10x16x1xf32>, vector<10x16x1xf32>, vector<10x16x1xf32>, vector<10x16x1xf32>, vector<10x16x1xf32>, vector<10x16x1xf32>, vector<10x16x1xf32>, vector<10x16x1xf32> -> vector<10x16x9xf32>
    %21 = vector.shape_cast %20 : vector<10x16x9xf32> to vector<160x9xf32>
    %c0_3 = arith.constant 0 : index
    %c0_4 = arith.constant 0 : index
    %22 = vector.load %arg3[%c0_3, %c0_4] : memref<9x32xf32, #tpu.memory_space<vmem>>, vector<9x32xf32>
    %cst = arith.constant dense<0.000000e+00> : vector<160x32xf32>
    %23 = tpu.matmul %21, %22, %cst {dimension_numbers = #tpu.dot_dimension_numbers<[1], [0], [0], [1], [0, 0, 1, 1], [], []>} : vector<160x9xf32>, vector<9x32xf32>, vector<160x32xf32> -> vector<160x32xf32>
    %c0_5 = arith.constant 0 : index
    %c0_6 = arith.constant 0 : index
    %24 = vector.load %arg4[%c0_5, %c0_6] : memref<1x32xf32, #tpu.memory_space<vmem>>, vector<1x32xf32>
    %25 = vector.broadcast %24 : vector<1x32xf32> to vector<160x32xf32>
    %26 = arith.addf %23, %25 : vector<160x32xf32>
    %cst_7 = arith.constant 0.000000e+00 : f32
    %27 = vector.broadcast %cst_7 : f32 to vector<160x32xf32>
    %28 = arith.maximumf %26, %27 : vector<160x32xf32>
    %29 = vector.shape_cast %28 : vector<160x32xf32> to vector<10x16x32xf32>
    %30 = arith.truncf %29 : vector<10x16x32xf32> to vector<10x16x32xbf16>
    %c0_8 = arith.constant 0 : index
    %c1 = arith.constant 1 : index
    %c0_9 = arith.constant 0 : index
    %31 = vector.load %arg10[%c0_8, %c1, %c0_9] : memref<10x18x32xbf16, #tpu.memory_space<vmem>>, vector<10x16x32xbf16>
    tpu.vector_store %arg10[%c0_8, %c1, %c0_9], %30 {strides = array<i32>} : memref<10x18x32xbf16, #tpu.memory_space<vmem>>, vector<10x16x32xbf16>,
    %cst_10 = arith.constant 0.000000e+00 : bf16
    %32 = vector.broadcast %cst_10 : bf16 to vector<10x1x32xbf16>
    %c0_11 = arith.constant 0 : index
    %c0_12 = arith.constant 0 : index
    %c0_13 = arith.constant 0 : index
    %33 = vector.load %arg10[%c0_11, %c0_12, %c0_13] : memref<10x18x32xbf16, #tpu.memory_space<vmem>>, vector<10x1x32xbf16>
    tpu.vector_store %arg10[%c0_11, %c0_12, %c0_13], %32 {strides = array<i32>} : memref<10x18x32xbf16, #tpu.memory_space<vmem>>, vector<10x1x32xbf16>,
    %cst_14 = arith.constant 0.000000e+00 : bf16
    %34 = vector.broadcast %cst_14 : bf16 to vector<10x1x32xbf16>
    %c0_15 = arith.constant 0 : index
    %c17 = arith.constant 17 : index
    %c0_16 = arith.constant 0 : index
    %35 = vector.load %arg10[%c0_15, %c17, %c0_16] : memref<10x18x32xbf16, #tpu.memory_space<vmem>>, vector<10x1x32xbf16>
    tpu.vector_store %arg10[%c0_15, %c17, %c0_16], %34 {strides = array<i32>} : memref<10x18x32xbf16, #tpu.memory_space<vmem>>, vector<10x1x32xbf16>,
    %c0_i32 = arith.constant 0 : i32
    %36 = arith.cmpi eq, %arg1, %c0_i32 : i32
    %37 = arith.extui %36 : i1 to i32
    %c0_i32_17 = arith.constant 0 : i32
    %38 = arith.cmpi ne, %37, %c0_i32_17 : i32
    scf.if %38 {
      %cst_61 = arith.constant 0.000000e+00 : bf16
      %70 = vector.broadcast %cst_61 : bf16 to vector<1x18x32xbf16>
      %c0_62 = arith.constant 0 : index
      %c0_63 = arith.constant 0 : index
      %c0_64 = arith.constant 0 : index
      %71 = vector.load %arg10[%c0_62, %c0_63, %c0_64] : memref<10x18x32xbf16, #tpu.memory_space<vmem>>, vector<1x18x32xbf16>
      tpu.vector_store %arg10[%c0_62, %c0_63, %c0_64], %70 {strides = array<i32>} : memref<10x18x32xbf16, #tpu.memory_space<vmem>>, vector<1x18x32xbf16>,
    } else {
    }
    %c0_i32_18 = arith.constant 0 : i32
    %39 = arith.cmpi eq, %arg1, %c0_i32_18 : i32
    %40 = arith.extui %39 : i1 to i32
    %c0_i32_19 = arith.constant 0 : i32
    %41 = arith.cmpi ne, %40, %c0_i32_19 : i32
    scf.if %41 {
      %cst_61 = arith.constant 0.000000e+00 : bf16
      %70 = vector.broadcast %cst_61 : bf16 to vector<1x18x32xbf16>
      %c9 = arith.constant 9 : index
      %c0_62 = arith.constant 0 : index
      %c0_63 = arith.constant 0 : index
      %71 = vector.load %arg10[%c9, %c0_62, %c0_63] : memref<10x18x32xbf16, #tpu.memory_space<vmem>>, vector<1x18x32xbf16>
      tpu.vector_store %arg10[%c9, %c0_62, %c0_63], %70 {strides = array<i32>} : memref<10x18x32xbf16, #tpu.memory_space<vmem>>, vector<1x18x32xbf16>,
    } else {
    }
    %c0_20 = arith.constant 0 : index
    %c0_21 = arith.constant 0 : index
    %c0_22 = arith.constant 0 : index
    %42 = vector.load %arg10[%c0_20, %c0_21, %c0_22] : memref<10x18x32xbf16, #tpu.memory_space<vmem>>, vector<8x16x32xbf16>
    %c0_23 = arith.constant 0 : index
    %c1_24 = arith.constant 1 : index
    %c0_25 = arith.constant 0 : index
    %43 = vector.load %arg10[%c0_23, %c1_24, %c0_25] : memref<10x18x32xbf16, #tpu.memory_space<vmem>>, vector<8x16x32xbf16>
    %c0_26 = arith.constant 0 : index
    %c2 = arith.constant 2 : index
    %c0_27 = arith.constant 0 : index
    %44 = vector.load %arg10[%c0_26, %c2, %c0_27] : memref<10x18x32xbf16, #tpu.memory_space<vmem>>, vector<8x16x32xbf16>
    %c1_28 = arith.constant 1 : index
    %c0_29 = arith.constant 0 : index
    %c0_30 = arith.constant 0 : index
    %45 = vector.load %arg10[%c1_28, %c0_29, %c0_30] : memref<10x18x32xbf16, #tpu.memory_space<vmem>>, vector<8x16x32xbf16>
    %c1_31 = arith.constant 1 : index
    %c1_32 = arith.constant 1 : index
    %c0_33 = arith.constant 0 : index
    %46 = vector.load %arg10[%c1_31, %c1_32, %c0_33] : memref<10x18x32xbf16, #tpu.memory_space<vmem>>, vector<8x16x32xbf16>
    %c1_34 = arith.constant 1 : index
    %c2_35 = arith.constant 2 : index
    %c0_36 = arith.constant 0 : index
    %47 = vector.load %arg10[%c1_34, %c2_35, %c0_36] : memref<10x18x32xbf16, #tpu.memory_space<vmem>>, vector<8x16x32xbf16>
    %c2_37 = arith.constant 2 : index
    %c0_38 = arith.constant 0 : index
    %c0_39 = arith.constant 0 : index
    %48 = vector.load %arg10[%c2_37, %c0_38, %c0_39] : memref<10x18x32xbf16, #tpu.memory_space<vmem>>, vector<8x16x32xbf16>
    %c2_40 = arith.constant 2 : index
    %c1_41 = arith.constant 1 : index
    %c0_42 = arith.constant 0 : index
    %49 = vector.load %arg10[%c2_40, %c1_41, %c0_42] : memref<10x18x32xbf16, #tpu.memory_space<vmem>>, vector<8x16x32xbf16>
    %c2_43 = arith.constant 2 : index
    %c2_44 = arith.constant 2 : index
    %c0_45 = arith.constant 0 : index
    %50 = vector.load %arg10[%c2_43, %c2_44, %c0_45] : memref<10x18x32xbf16, #tpu.memory_space<vmem>>, vector<8x16x32xbf16>
    %51 = tpu.concatenate %42, %43, %44, %45, %46, %47, %48, %49, %50 in 2 : vector<8x16x32xbf16>, vector<8x16x32xbf16>, vector<8x16x32xbf16>, vector<8x16x32xbf16>, vector<8x16x32xbf16>, vector<8x16x32xbf16>, vector<8x16x32xbf16>, vector<8x16x32xbf16>, vector<8x16x32xbf16> -> vector<8x16x288xbf16>
    %52 = vector.shape_cast %51 : vector<8x16x288xbf16> to vector<128x288xbf16>
    %c0_46 = arith.constant 0 : index
    %c0_47 = arith.constant 0 : index
    %53 = vector.load %arg5[%c0_46, %c0_47] : memref<288x64xbf16, #tpu.memory_space<vmem>>, vector<288x64xbf16>
    %cst_48 = arith.constant dense<0.000000e+00> : vector<128x64xf32>
    %54 = tpu.matmul %52, %53, %cst_48 {dimension_numbers = #tpu.dot_dimension_numbers<[1], [0], [0], [1], [0, 0, 1, 1], [], []>} : vector<128x288xbf16>, vector<288x64xbf16>, vector<128x64xf32> -> vector<128x64xf32>
    %c0_49 = arith.constant 0 : index
    %c0_50 = arith.constant 0 : index
    %55 = vector.load %arg6[%c0_49, %c0_50] : memref<1x64xf32, #tpu.memory_space<vmem>>, vector<1x64xf32>
    %56 = vector.broadcast %55 : vector<1x64xf32> to vector<128x64xf32>
    %57 = arith.addf %54, %56 : vector<128x64xf32>
    %cst_51 = arith.constant 0.000000e+00 : f32
    %58 = vector.broadcast %cst_51 : f32 to vector<128x64xf32>
    %59 = arith.maximumf %57, %58 : vector<128x64xf32>
    %60 = vector.shape_cast %59 : vector<128x64xf32> to vector<8x16x64xf32>
    %cst_52 = arith.constant dense<0.000000e+00> : vector<8x64xf32>
    %61 = vector.multi_reduction <add>, %60, %cst_52 [1] : vector<8x16x64xf32> to vector<8x64xf32>
    %c0_53 = arith.constant 0 : index
    %c0_54 = arith.constant 0 : index
    %62 = vector.load %arg7[%c0_53, %c0_54] : memref<64x32xf32, #tpu.memory_space<vmem>>, vector<64x32xf32>
    %cst_55 = arith.constant dense<0.000000e+00> : vector<8x32xf32>
    %63 = tpu.matmul %61, %62, %cst_55 {dimension_numbers = #tpu.dot_dimension_numbers<[1], [0], [0], [1], [0, 0, 1, 1], [], []>} : vector<8x64xf32>, vector<64x32xf32>, vector<8x32xf32> -> vector<8x32xf32>
    %c0_56 = arith.constant 0 : index
    %c0_57 = arith.constant 0 : index
    %64 = vector.load %arg8[%c0_56, %c0_57] : memref<1x32xf32, #tpu.memory_space<vmem>>, vector<1x32xf32>
    %65 = vector.broadcast %64 : vector<1x32xf32> to vector<8x32xf32>
    %66 = arith.addf %63, %65 : vector<8x32xf32>
    %c0_58 = arith.constant 0 : index
    %c0_59 = arith.constant 0 : index
    %c0_60 = arith.constant 0 : index
    %67 = vector.load %arg9[%c0_58, %c0_59, %c0_60] : memref<1x8x32xf32, #tpu.memory_space<vmem>>, vector<1x8x32xf32>
    %68 = vector.shape_cast %67 : vector<1x8x32xf32> to vector<8x32xf32>
    %69 = vector.shape_cast %66 : vector<8x32xf32> to vector<1x8x32xf32>
    tpu.vector_store %arg9[%c0_58, %c0_59, %c0_60], %69 {strides = array<i32>} : memref<1x8x32xf32, #tpu.memory_space<vmem>>, vector<1x8x32xf32>,
    return
  }
  func.func @transform_0(%arg0: i32, %arg1: i32) -> (i32, i32, i32, i32) {
    %c0_i32 = arith.constant 0 : i32
    %c0_i32_0 = arith.constant 0 : i32
    %c0_i32_1 = arith.constant 0 : i32
    return %arg0, %arg1, %c0_i32, %c0_i32_0 : i32, i32, i32, i32
  }
  func.func @transform_1(%arg0: i32, %arg1: i32) -> (i32, i32) {
    %c0_i32 = arith.constant 0 : i32
    %c0_i32_0 = arith.constant 0 : i32
    %c0_i32_1 = arith.constant 0 : i32
    return %c0_i32, %c0_i32_0 : i32, i32
  }
  func.func @transform_2(%arg0: i32, %arg1: i32) -> (i32, i32) {
    %c0_i32 = arith.constant 0 : i32
    %c0_i32_0 = arith.constant 0 : i32
    %c0_i32_1 = arith.constant 0 : i32
    return %c0_i32, %c0_i32_0 : i32, i32
  }
  func.func @transform_3(%arg0: i32, %arg1: i32) -> (i32, i32) {
    %c0_i32 = arith.constant 0 : i32
    %c0_i32_0 = arith.constant 0 : i32
    %c0_i32_1 = arith.constant 0 : i32
    return %c0_i32, %c0_i32_0 : i32, i32
  }
  func.func @transform_4(%arg0: i32, %arg1: i32) -> (i32, i32) {
    %c0_i32 = arith.constant 0 : i32
    %c0_i32_0 = arith.constant 0 : i32
    %c0_i32_1 = arith.constant 0 : i32
    return %c0_i32, %c0_i32_0 : i32, i32
  }
  func.func @transform_5(%arg0: i32, %arg1: i32) -> (i32, i32) {
    %c0_i32 = arith.constant 0 : i32
    %c0_i32_0 = arith.constant 0 : i32
    %c0_i32_1 = arith.constant 0 : i32
    return %c0_i32, %c0_i32_0 : i32, i32
  }
  func.func @transform_6(%arg0: i32, %arg1: i32) -> (i32, i32) {
    %c0_i32 = arith.constant 0 : i32
    %c0_i32_0 = arith.constant 0 : i32
    %c0_i32_1 = arith.constant 0 : i32
    return %c0_i32, %c0_i32_0 : i32, i32
  }
  func.func @transform_7(%arg0: i32, %arg1: i32) -> (i32, i32, i32) {
    %c0_i32 = arith.constant 0 : i32
    %c0_i32_0 = arith.constant 0 : i32
    return %arg0, %arg1, %c0_i32 : i32, i32, i32
  }
}

</mosaic_0001>

<llo_original>
// kernel: tpu_custom_call.1
$region0: #{tpu_custom_call.1}
  #allocation0 [shape = 'u32[]', space=smem, size = 0x4, offset = 0x4, fixed_abs, tag = 'smem constant byte address 0x4 - core index']
  #allocation1 [shape = 'u32[144,128]{1,0:T(1,128)}', space=vmem, size = 0x12000, scoped, tag = 'internal scratch']
  #allocation2 [shape = 'bf16[10,18,32]{2,1,0:T(8,128)(2,1)}', space=vmem, size = 0xf000, scoped, tag = 'scratch operand']
  %s0 = inlined_call_operand.vmem [shape: f32[2,1,12,18], index: 0, kind: input, shape index: {}]
  %s1 = inlined_call_operand.vmem [shape: f32[9,32], index: 1, kind: input, shape index: {}]
  %s2 = inlined_call_operand.vmem [shape: f32[1,32], index: 2, kind: input, shape index: {}]
  %s3 = inlined_call_operand.vmem [shape: bf16[288,64], index: 3, kind: input, shape index: {}]
  %s4 = inlined_call_operand.vmem [shape: f32[1,64], index: 4, kind: input, shape index: {}]
  %s5 = inlined_call_operand.vmem [shape: f32[64,32], index: 5, kind: input, shape index: {}]
  %s6 = inlined_call_operand.vmem [shape: f32[1,32], index: 6, kind: input, shape index: {}]
  %s7 = inlined_call_operand.hbm [shape: f32[2,8,32], index: 7, kind: output, shape index: {}]
  %s8 = sld [smem:[#allocation0]]
  $region65: #{tpu_custom_call.1} parent=0
    _
  %s10 = ssub.s32 1, %s8
  %s11 = scalar_select 0, %s10, %s8
  $region1: #{tpu_custom_call.1} parent=0
    #allocation3 [shape = 'u8[8192]{0}', space=vmem, size = 0x2000, scoped, tag = 'output window, operand 0']
    #allocation4 [shape = 's32[2]{0}', space=sflag, size = 0x8, scoped, tag = 'scoped memory for tpu_custom_call.1']
    %12 = vsyncpa [#allocation4], 0
    %s13 = scalar_lea.sflag [#allocation4], 1
    %14 = vsyncpa %s13, 0
    loop: start=0, step=1, limit=4
    $region2: #{tpu_custom_call.1} parent=1 // loop_pre_header
      _
    $region3: #{tpu_custom_call.1} parent=1 // loop_header
      %s16 = sphi 0, %s20
      %p17 = scmp.ge.s32.totalorder %s16, 4
      %s23 = sphi 0, %s35
      %s24 = sphi 0, %s31
      %s25 = sphi 0, %s23
      %s26 = sphi 0, %s24
      %s27 = sphi 0, %s25
      %s28 = sphi 0, %s26
      %s40 = sphi 0, %s42
      %s43 = sphi 0, %s40
      %s44 = sphi 0, %s43
      %s60 = sphi 0, %s44
      %s64 = sphi 0, %s64
      %s66 = sphi 0, %s64
      %s67 = sphi 0, %s66
      %s81 = sphi 0, %s67
      %s85 = sphi 0, %s85
      %s87 = sphi 0, %s85
      %s88 = sphi 0, %s87
      %s102 = sphi 0, %s88
      %s106 = sphi 0, %s106
      %s108 = sphi 0, %s106
      %s109 = sphi 0, %s108
      %s123 = sphi 0, %s109
      %s127 = sphi 0, %s127
      %s129 = sphi 0, %s127
      %s130 = sphi 0, %s129
      %s144 = sphi 0, %s130
      %s148 = sphi 0, %s148
      %s150 = sphi 0, %s148
      %s151 = sphi 0, %s150
      %s165 = sphi 0, %s151
      %s169 = sphi 0, %s169
      %s171 = sphi 0, %s169
      %s172 = sphi 0, %s171
      %s186 = sphi 0, %s172
      %s194 = sphi 0, %s196
      %s197 = sphi 0, %s194
      %s198 = sphi 0, %s197
      %s214 = sphi 0, %s198
    $region4: #{tpu_custom_call.1} parent=1 // loop_header_branch
      %19 = sbr.rel (%p17) target = $region8
    $region5: #{tpu_custom_call.1} parent=1 // loop_body
      %s21 = ssub.s32 %s16, 1
      %s22 = ssub.s32 %s16, 2
      %s29 = sadd.s32 1, %s24
      %p30 = scmp.ge.s32.totalorder %s29, 1
      %s31 = scalar_select %p30, 0, %s29
      %s32 = sadd.s32 1, %s23
      %s33 = scalar_select %p30, %s32, %s23
      %p34 = scmp.ge.s32.totalorder %s33, 2
      %s35 = scalar_select %p34, 0, %s33
      %s36 = ssub.s32 %s23, %s35
      %s37 = ssub.s32 %s24, %s31
      %s38 = sor.u32 %s36, %s37
      %p39 = scmp.eq.s32.totalorder %s38, 0
      %s41 = sadd.s32 %s40, 1
      %s42 = scalar_select %p39, %s40, %s41
      %p45 = pneg %p39
      %p46 = scmp.eq.s32.totalorder %s16, 1
      %p47 = por %p45, %p46
      %p48 = scmp.ne.s32.totalorder %s40, %s43
      %p49 = scmp.eq.s32.totalorder %s16, 0
      %p50 = por %p48, %p49
      %p51 = scmp.ne.s32.totalorder %s40, %s43
      %p52 = scmp.eq.s32.totalorder %s21, 1
      %p53 = por %p51, %p52
      %p54 = scmp.ne.s32.totalorder %s43, %s44
      %p55 = scmp.eq.s32.totalorder %s21, 0
      %p56 = por %p54, %p55
      %p57 = scmp.ne.s32.totalorder %s43, %s44
      %p58 = scmp.eq.s32.totalorder %s22, 1
      %p59 = por %p57, %p58
      %p61 = scmp.ne.s32.totalorder %s44, %s60
      %p62 = scmp.eq.s32.totalorder %s22, 0
      %p63 = por %p61, %p62
      %s65 = sadd.s32 %s64, 1
      %p68 = scmp.eq.s32.totalorder %s16, 1
      %p69 = scmp.ne.s32.totalorder %s64, %s66
      %p70 = scmp.eq.s32.totalorder %s16, 0
      %p71 = por %p69, %p70
      %p72 = scmp.ne.s32.totalorder %s64, %s66
      %p73 = scmp.eq.s32.totalorder %s21, 1
      %p74 = por %p72, %p73
      %p75 = scmp.ne.s32.totalorder %s66, %s67
      %p76 = scmp.eq.s32.totalorder %s21, 0
      %p77 = por %p75, %p76
      %p78 = scmp.ne.s32.totalorder %s66, %s67
      %p79 = scmp.eq.s32.totalorder %s22, 1
      %p80 = por %p78, %p79
      %p82 = scmp.ne.s32.totalorder %s67, %s81
      %p83 = scmp.eq.s32.totalorder %s22, 0
      %p84 = por %p82, %p83
      %s86 = sadd.s32 %s85, 1
      %p89 = scmp.eq.s32.totalorder %s16, 1
      %p90 = scmp.ne.s32.totalorder %s85, %s87
      %p91 = scmp.eq.s32.totalorder %s16, 0
      %p92 = por %p90, %p91
      %p93 = scmp.ne.s32.totalorder %s85, %s87
      %p94 = scmp.eq.s32.totalorder %s21, 1
      %p95 = por %p93, %p94
      %p96 = scmp.ne.s32.totalorder %s87, %s88
      %p97 = scmp.eq.s32.totalorder %s21, 0
      %p98 = por %p96, %p97
      %p99 = scmp.ne.s32.totalorder %s87, %s88
      %p100 = scmp.eq.s32.totalorder %s22, 1
      %p101 = por %p99, %p100
      %p103 = scmp.ne.s32.totalorder %s88, %s102
      %p104 = scmp.eq.s32.totalorder %s22, 0
      %p105 = por %p103, %p104
      %s107 = sadd.s32 %s106, 1
      %p110 = scmp.eq.s32.totalorder %s16, 1
      %p111 = scmp.ne.s32.totalorder %s106, %s108
      %p112 = scmp.eq.s32.totalorder %s16, 0
      %p113 = por %p111, %p112
      %p114 = scmp.ne.s32.totalorder %s106, %s108
      %p115 = scmp.eq.s32.totalorder %s21, 1
      %p116 = por %p114, %p115
      %p117 = scmp.ne.s32.totalorder %s108, %s109
      %p118 = scmp.eq.s32.totalorder %s21, 0
      %p119 = por %p117, %p118
      %p120 = scmp.ne.s32.totalorder %s108, %s109
      %p121 = scmp.eq.s32.totalorder %s22, 1
      %p122 = por %p120, %p121
      %p124 = scmp.ne.s32.totalorder %s109, %s123
      %p125 = scmp.eq.s32.totalorder %s22, 0
      %p126 = por %p124, %p125
      %s128 = sadd.s32 %s127, 1
      %p131 = scmp.eq.s32.totalorder %s16, 1
      %p132 = scmp.ne.s32.totalorder %s127, %s129
      %p133 = scmp.eq.s32.totalorder %s16, 0
      %p134 = por %p132, %p133
      %p135 = scmp.ne.s32.totalorder %s127, %s129
      %p136 = scmp.eq.s32.totalorder %s21, 1
      %p137 = por %p135, %p136
      %p138 = scmp.ne.s32.totalorder %s129, %s130
      %p139 = scmp.eq.s32.totalorder %s21, 0
      %p140 = por %p138, %p139
      %p141 = scmp.ne.s32.totalorder %s129, %s130
      %p142 = scmp.eq.s32.totalorder %s22, 1
      %p143 = por %p141, %p142
      %p145 = scmp.ne.s32.totalorder %s130, %s144
      %p146 = scmp.eq.s32.totalorder %s22, 0
      %p147 = por %p145, %p146
      %s149 = sadd.s32 %s148, 1
      %p152 = scmp.eq.s32.totalorder %s16, 1
      %p153 = scmp.ne.s32.totalorder %s148, %s150
      %p154 = scmp.eq.s32.totalorder %s16, 0
      %p155 = por %p153, %p154
      %p156 = scmp.ne.s32.totalorder %s148, %s150
      %p157 = scmp.eq.s32.totalorder %s21, 1
      %p158 = por %p156, %p157
      %p159 = scmp.ne.s32.totalorder %s150, %s151
      %p160 = scmp.eq.s32.totalorder %s21, 0
      %p161 = por %p159, %p160
      %p162 = scmp.ne.s32.totalorder %s150, %s151
      %p163 = scmp.eq.s32.totalorder %s22, 1
      %p164 = por %p162, %p163
      %p166 = scmp.ne.s32.totalorder %s151, %s165
      %p167 = scmp.eq.s32.totalorder %s22, 0
      %p168 = por %p166, %p167
      %s170 = sadd.s32 %s169, 1
      %p173 = scmp.eq.s32.totalorder %s16, 1
      %p174 = scmp.ne.s32.totalorder %s169, %s171
      %p175 = scmp.eq.s32.totalorder %s16, 0
      %p176 = por %p174, %p175
      %p177 = scmp.ne.s32.totalorder %s169, %s171
      %p178 = scmp.eq.s32.totalorder %s21, 1
      %p179 = por %p177, %p178
      %p180 = scmp.ne.s32.totalorder %s171, %s172
      %p181 = scmp.eq.s32.totalorder %s21, 0
      %p182 = por %p180, %p181
      %p183 = scmp.ne.s32.totalorder %s171, %s172
      %p184 = scmp.eq.s32.totalorder %s22, 1
      %p185 = por %p183, %p184
      %p187 = scmp.ne.s32.totalorder %s172, %s186
      %p188 = scmp.eq.s32.totalorder %s22, 0
      %p189 = por %p187, %p188
      %s190 = ssub.s32 %s23, %s35
      %s191 = ssub.s32 %s24, %s31
      %s192 = sor.u32 %s190, %s191
      %p193 = scmp.eq.s32.totalorder %s192, 0
      %s195 = sadd.s32 %s194, 1
      %s196 = scalar_select %p193, %s194, %s195
      %p199 = pneg %p193
      %p200 = scmp.eq.s32.totalorder %s16, 1
      %p201 = por %p199, %p200
      %p202 = scmp.ne.s32.totalorder %s194, %s197
      %p203 = scmp.eq.s32.totalorder %s16, 0
      %p204 = por %p202, %p203
      %p205 = scmp.ne.s32.totalorder %s194, %s197
      %p206 = scmp.eq.s32.totalorder %s21, 1
      %p207 = por %p205, %p206
      %p208 = scmp.ne.s32.totalorder %s197, %s198
      %p209 = scmp.eq.s32.totalorder %s21, 0
      %p210 = por %p208, %p209
      %p211 = scmp.ne.s32.totalorder %s197, %s198
      %p212 = scmp.eq.s32.totalorder %s22, 1
      %p213 = por %p211, %p212
      %p215 = scmp.ne.s32.totalorder %s198, %s214
      %p216 = scmp.eq.s32.totalorder %s22, 0
      %p217 = por %p215, %p216
      %p218 = scmp.le.s32.totalorder 1, %s16
      %p219 = scmp.lt.s32.totalorder %s16, 3
      %p220 = pnand %p218, %p219
      %p221 = pneg %p220
      // Predicated region
      $region9: #{tpu_custom_call.1} parent=5 // pred_check
        _
      $region10: #{tpu_custom_call.1} parent=5 // pred_check_branch
        %223 = sbr.rel (%p220) target = $region12
      $region11: #{tpu_custom_call.1} parent=5 // pred_region
        %s224 = ssub.s32 %s16, 1
        // Predicated region
        $region13: #{tpu_custom_call.1} parent=11 // pred_check
          %p225 = pneg %p77
        $region14: #{tpu_custom_call.1} parent=11 // pred_check_branch
          %227 = sbr.rel (%p225) target = $region16
        $region15: #{tpu_custom_call.1} parent=11 // pred_region
          _
        $region16: #{tpu_custom_call.1} parent=11 // pred_fallthru
          _
        // Predicated region
        $region17: #{tpu_custom_call.1} parent=11 // pred_check
          %p228 = pneg %p98
        $region18: #{tpu_custom_call.1} parent=11 // pred_check_branch
          %230 = sbr.rel (%p228) target = $region20
        $region19: #{tpu_custom_call.1} parent=11 // pred_region
          _
        $region20: #{tpu_custom_call.1} parent=11 // pred_fallthru
          _
        // Predicated region
        $region21: #{tpu_custom_call.1} parent=11 // pred_check
          %p231 = pneg %p119
        $region22: #{tpu_custom_call.1} parent=11 // pred_check_branch
          %233 = sbr.rel (%p231) target = $region24
        $region23: #{tpu_custom_call.1} parent=11 // pred_region
          _
        $region24: #{tpu_custom_call.1} parent=11 // pred_fallthru
          _
        // Predicated region
        $region25: #{tpu_custom_call.1} parent=11 // pred_check
          %p234 = pneg %p140
        $region26: #{tpu_custom_call.1} parent=11 // pred_check_branch
          %236 = sbr.rel (%p234) target = $region28
        $region27: #{tpu_custom_call.1} parent=11 // pred_region
          _
        $region28: #{tpu_custom_call.1} parent=11 // pred_fallthru
          _
        // Predicated region
        $region29: #{tpu_custom_call.1} parent=11 // pred_check
          %p237 = pneg %p161
        $region30: #{tpu_custom_call.1} parent=11 // pred_check_branch
          %239 = sbr.rel (%p237) target = $region32
        $region31: #{tpu_custom_call.1} parent=11 // pred_region
          _
        $region32: #{tpu_custom_call.1} parent=11 // pred_fallthru
          _
        // Predicated region
        $region33: #{tpu_custom_call.1} parent=11 // pred_check
          %p240 = pneg %p182
        $region34: #{tpu_custom_call.1} parent=11 // pred_check_branch
          %242 = sbr.rel (%p240) target = $region36
        $region35: #{tpu_custom_call.1} parent=11 // pred_region
          _
        $region36: #{tpu_custom_call.1} parent=11 // pred_fallthru
          _
      $region12: #{tpu_custom_call.1} parent=5 // pred_fallthru
        _
      %p243 = scmp.lt.s32.totalorder %s16, 2
      // Predicated region
      $region37: #{tpu_custom_call.1} parent=5 // pred_check
        %p244 = pneg %p243
      $region38: #{tpu_custom_call.1} parent=5 // pred_check_branch
        %246 = sbr.rel (%p244) target = $region40
      $region39: #{tpu_custom_call.1} parent=5 // pred_region
        // Predicated region
        $region41: #{tpu_custom_call.1} parent=39 // pred_check
          %p247 = pneg %p50
        $region42: #{tpu_custom_call.1} parent=39 // pred_check_branch
          %249 = sbr.rel (%p247) target = $region44
        $region43: #{tpu_custom_call.1} parent=39 // pred_region
          %p250 = scmp.lt.s32.totalorder %s23, 1
          %s251 = scalar_select %p250, %s23, 1
          %p252 = scmp.lt.s32.totalorder %s24, 0
          %s253 = scalar_select %p252, %s24, 0
          %s254 = smul.addr %s253, 2
          %s255 = smul.addr %s251, 2
          %s256 = sadd.s32 %s254, %s255
          %s257 = smul.addr %s256, 8
          %s258 = scalar_lea.vmem %s0, %s257
        $region44: #{tpu_custom_call.1} parent=39 // pred_fallthru
          _
      $region40: #{tpu_custom_call.1} parent=5 // pred_fallthru
        _
      %p259 = scmp.le.s32.totalorder 1, %s16
      %p260 = scmp.lt.s32.totalorder %s16, 3
      %p261 = pnand %p259, %p260
      %p262 = pneg %p261
      // Predicated region
      $region45: #{tpu_custom_call.1} parent=5 // pred_check
        _
      $region46: #{tpu_custom_call.1} parent=5 // pred_check_branch
        %264 = sbr.rel (%p261) target = $region48
      $region47: #{tpu_custom_call.1} parent=5 // pred_region
        %s265 = ssub.s32 %s16, 1
        %p266 = scmp.lt.s32.totalorder %s25, 1
        %s267 = scalar_select %p266, %s25, 1
        %p268 = scmp.lt.s32.totalorder %s26, 0
        %s269 = scalar_select %p268, %s26, 0
        %s270 = smul.addr %s269, 2
        %s271 = smul.addr %s267, 2
        %s272 = sadd.s32 %s270, %s271
        %s273 = smul.addr %s272, 8
        %s274 = scalar_lea.vmem %s0, %s273
        %p275 = pneg %p56
        %p276 = pneg %p53
        %p277 = pneg %p77
        %p278 = pneg %p74
        %p279 = pneg %p98
        %p280 = pneg %p95
        %p281 = pneg %p119
        %p282 = pneg %p116
        %p283 = pneg %p140
        %p284 = pneg %p137
        %p285 = pneg %p161
        %p286 = pneg %p158
        %p287 = pneg %p182
        %p288 = pneg %p179
        %p289 = pneg %p210
        %p290 = pneg %p207
        %s291 = sand.u32 %s197, 1
        %s292 = scalar_lea.sflag [#allocation4], %s291
        %s293 = sand.u32 %s197, 1
        %s294 = smul.addr %s293, 8
        %s295 = scalar_lea.vmem [#allocation3], %s294
        %p296 = scmp.lt.s32.totalorder %s25, 1
        %s297 = scalar_select %p296, %s25, 1
        %p298 = scmp.lt.s32.totalorder %s26, 0
        %s299 = scalar_select %p298, %s26, 0
        %s300 = smul.addr %s299, 2
        %s301 = smul.addr %s297, 2
        %s302 = sadd.s32 %s300, %s301
        %s303 = smul.addr %s302, 8
        %s304 = scalar_lea.vmem %s0, %s303
        %v306 = vld [vmem:[%s304] sm:$0xff]
        %v307 = vld [vmem:[%s304 + $0x8] sm:$0xf]
        %v308 = vlaneseq
        %v309 = vshrl.u32 %v308, 7
        %v310 = vsub.s32 0, %v309
        %v311 = vrot.slane %v306, %v310
        %313 = vbcast.lane.b32.xlu0 %v311, 256
        %v314 = vpop.permute.xlu0 %313
        %s316 = sor.u32 256, 8
        %317 = vbcast.lane.b32.xlu0 %v311, %s316
        %v318 = vpop.permute.xlu0 %317
        %v319 = vlaneseq
        %v320 = vshrl.u32 %v319, 7
        %v321 = vsub.s32 1, %v320
        %v322 = vrot.slane %v306, %v321
        %324 = vbcast.lane.b32.xlu0 %v322, 256
        %v325 = vpop.permute.xlu0 %324
        %s327 = sor.u32 256, 8
        %328 = vbcast.lane.b32.xlu0 %v322, %s327
        %v329 = vpop.permute.xlu0 %328
        %v330 = vlaneseq
        %v331 = vshrl.u32 %v330, 7
        %v332 = vsub.s32 2, %v331
        %v333 = vrot.slane %v306, %v332
        %335 = vbcast.lane.b32.xlu0 %v333, 256
        %v336 = vpop.permute.xlu0 %335
        %s338 = sor.u32 256, 8
        %339 = vbcast.lane.b32.xlu0 %v333, %s338
        %v340 = vpop.permute.xlu0 %339
        %v341 = vlaneseq
        %v342 = vshrl.u32 %v341, 7
        %v343 = vsub.s32 3, %v342
        %v344 = vrot.slane %v306, %v343
        %346 = vbcast.lane.b32.xlu0 %v344, 256
        %v347 = vpop.permute.xlu0 %346
        %s349 = sor.u32 256, 8
        %350 = vbcast.lane.b32.xlu0 %v344, %s349
        %v351 = vpop.permute.xlu0 %350
        %v352 = vlaneseq
        %v353 = vshrl.u32 %v352, 7
        %v354 = vsub.s32 4, %v353
        %v355 = vrot.slane %v306, %v354
        %357 = vbcast.lane.b32.xlu0 %v355, 256
        %v358 = vpop.permute.xlu0 %357
        %s360 = sor.u32 256, 8
        %361 = vbcast.lane.b32.xlu0 %v355, %s360
        %v362 = vpop.permute.xlu0 %361
        %v363 = vlaneseq
        %v364 = vshrl.u32 %v363, 7
        %v365 = vsub.s32 5, %v364
        %v366 = vrot.slane %v306, %v365
        %368 = vbcast.lane.b32.xlu0 %v366, 256
        %v369 = vpop.permute.xlu0 %368
        %s371 = sor.u32 256, 8
        %372 = vbcast.lane.b32.xlu0 %v366, %s371
        %v373 = vpop.permute.xlu0 %372
        %v374 = vlaneseq
        %v375 = vshrl.u32 %v374, 7
        %v376 = vsub.s32 6, %v375
        %v377 = vrot.slane %v306, %v376
        %379 = vbcast.lane.b32.xlu0 %v377, 256
        %v380 = vpop.permute.xlu0 %379
        %s382 = sor.u32 256, 8
        %383 = vbcast.lane.b32.xlu0 %v377, %s382
        %v384 = vpop.permute.xlu0 %383
        %v385 = vlaneseq
        %v386 = vshrl.u32 %v385, 7
        %v387 = vsub.s32 7, %v386
        %v388 = vrot.slane %v306, %v387
        %390 = vbcast.lane.b32.xlu0 %v388, 256
        %v391 = vpop.permute.xlu0 %390
        %s393 = sor.u32 256, 8
        %394 = vbcast.lane.b32.xlu0 %v388, %s393
        %v395 = vpop.permute.xlu0 %394
        %v396 = vlaneseq
        %v397 = vshrl.u32 %v396, 7
        %v398 = vsub.s32 0, %v397
        %v399 = vrot.slane %v307, %v398
        %401 = vbcast.lane.b32.xlu0 %v399, 256
        %v402 = vpop.permute.xlu0 %401
        %s404 = sor.u32 256, 8
        %405 = vbcast.lane.b32.xlu0 %v399, %s404
        %v406 = vpop.permute.xlu0 %405
        %v407 = vlaneseq
        %v408 = vshrl.u32 %v407, 7
        %v409 = vsub.s32 1, %v408
        %v410 = vrot.slane %v307, %v409
        %412 = vbcast.lane.b32.xlu0 %v410, 256
        %v413 = vpop.permute.xlu0 %412
        %s415 = sor.u32 256, 8
        %416 = vbcast.lane.b32.xlu0 %v410, %s415
        %v417 = vpop.permute.xlu0 %416
        %s419 = sor.u32 256, 1
        %420 = vbcast.lane.b32.xlu0 %v311, %s419
        %v421 = vpop.permute.xlu0 %420
        %s423 = sor.u32 256, 9
        %424 = vbcast.lane.b32.xlu0 %v311, %s423
        %v425 = vpop.permute.xlu0 %424
        %s427 = sor.u32 256, 1
        %428 = vbcast.lane.b32.xlu0 %v322, %s427
        %v429 = vpop.permute.xlu0 %428
        %s431 = sor.u32 256, 9
        %432 = vbcast.lane.b32.xlu0 %v322, %s431
        %v433 = vpop.permute.xlu0 %432
        %s435 = sor.u32 256, 1
        %436 = vbcast.lane.b32.xlu0 %v333, %s435
        %v437 = vpop.permute.xlu0 %436
        %s439 = sor.u32 256, 9
        %440 = vbcast.lane.b32.xlu0 %v333, %s439
        %v441 = vpop.permute.xlu0 %440
        %s443 = sor.u32 256, 1
        %444 = vbcast.lane.b32.xlu0 %v344, %s443
        %v445 = vpop.permute.xlu0 %444
        %s447 = sor.u32 256, 9
        %448 = vbcast.lane.b32.xlu0 %v344, %s447
        %v449 = vpop.permute.xlu0 %448
        %s451 = sor.u32 256, 1
        %452 = vbcast.lane.b32.xlu0 %v355, %s451
        %v453 = vpop.permute.xlu0 %452
        %s455 = sor.u32 256, 9
        %456 = vbcast.lane.b32.xlu0 %v355, %s455
        %v457 = vpop.permute.xlu0 %456
        %s459 = sor.u32 256, 1
        %460 = vbcast.lane.b32.xlu0 %v366, %s459
        %v461 = vpop.permute.xlu0 %460
        %s463 = sor.u32 256, 9
        %464 = vbcast.lane.b32.xlu0 %v366, %s463
        %v465 = vpop.permute.xlu0 %464
        %s467 = sor.u32 256, 1
        %468 = vbcast.lane.b32.xlu0 %v377, %s467
        %v469 = vpop.permute.xlu0 %468
        %s471 = sor.u32 256, 9
        %472 = vbcast.lane.b32.xlu0 %v377, %s471
        %v473 = vpop.permute.xlu0 %472
        %s475 = sor.u32 256, 1
        %476 = vbcast.lane.b32.xlu0 %v388, %s475
        %v477 = vpop.permute.xlu0 %476
        %s479 = sor.u32 256, 9
        %480 = vbcast.lane.b32.xlu0 %v388, %s479
        %v481 = vpop.permute.xlu0 %480
        %s483 = sor.u32 256, 1
        %484 = vbcast.lane.b32.xlu0 %v399, %s483
        %v485 = vpop.permute.xlu0 %484
        %s487 = sor.u32 256, 9
        %488 = vbcast.lane.b32.xlu0 %v399, %s487
        %v489 = vpop.permute.xlu0 %488
        %s491 = sor.u32 256, 1
        %492 = vbcast.lane.b32.xlu0 %v410, %s491
        %v493 = vpop.permute.xlu0 %492
        %s495 = sor.u32 256, 9
        %496 = vbcast.lane.b32.xlu0 %v410, %s495
        %v497 = vpop.permute.xlu0 %496
        %s499 = sor.u32 256, 2
        %500 = vbcast.lane.b32.xlu0 %v311, %s499
        %v501 = vpop.permute.xlu0 %500
        %s503 = sor.u32 256, 10
        %504 = vbcast.lane.b32.xlu0 %v311, %s503
        %v505 = vpop.permute.xlu0 %504
        %s507 = sor.u32 256, 2
        %508 = vbcast.lane.b32.xlu0 %v322, %s507
        %v509 = vpop.permute.xlu0 %508
        %s511 = sor.u32 256, 10
        %512 = vbcast.lane.b32.xlu0 %v322, %s511
        %v513 = vpop.permute.xlu0 %512
        %s515 = sor.u32 256, 2
        %516 = vbcast.lane.b32.xlu0 %v333, %s515
        %v517 = vpop.permute.xlu0 %516
        %s519 = sor.u32 256, 10
        %520 = vbcast.lane.b32.xlu0 %v333, %s519
        %v521 = vpop.permute.xlu0 %520
        %s523 = sor.u32 256, 2
        %524 = vbcast.lane.b32.xlu0 %v344, %s523
        %v525 = vpop.permute.xlu0 %524
        %s527 = sor.u32 256, 10
        %528 = vbcast.lane.b32.xlu0 %v344, %s527
        %v529 = vpop.permute.xlu0 %528
        %s531 = sor.u32 256, 2
        %532 = vbcast.lane.b32.xlu0 %v355, %s531
        %v533 = vpop.permute.xlu0 %532
        %s535 = sor.u32 256, 10
        %536 = vbcast.lane.b32.xlu0 %v355, %s535
        %v537 = vpop.permute.xlu0 %536
        %s539 = sor.u32 256, 2
        %540 = vbcast.lane.b32.xlu0 %v366, %s539
        %v541 = vpop.permute.xlu0 %540
        %s543 = sor.u32 256, 10
        %544 = vbcast.lane.b32.xlu0 %v366, %s543
        %v545 = vpop.permute.xlu0 %544
        %s547 = sor.u32 256, 2
        %548 = vbcast.lane.b32.xlu0 %v377, %s547
        %v549 = vpop.permute.xlu0 %548
        %s551 = sor.u32 256, 10
        %552 = vbcast.lane.b32.xlu0 %v377, %s551
        %v553 = vpop.permute.xlu0 %552
        %s555 = sor.u32 256, 2
        %556 = vbcast.lane.b32.xlu0 %v388, %s555
        %v557 = vpop.permute.xlu0 %556
        %s559 = sor.u32 256, 10
        %560 = vbcast.lane.b32.xlu0 %v388, %s559
        %v561 = vpop.permute.xlu0 %560
        %s563 = sor.u32 256, 2
        %564 = vbcast.lane.b32.xlu0 %v399, %s563
        %v565 = vpop.permute.xlu0 %564
        %s567 = sor.u32 256, 10
        %568 = vbcast.lane.b32.xlu0 %v399, %s567
        %v569 = vpop.permute.xlu0 %568
        %s571 = sor.u32 256, 2
        %572 = vbcast.lane.b32.xlu0 %v410, %s571
        %v573 = vpop.permute.xlu0 %572
        %s575 = sor.u32 256, 10
        %576 = vbcast.lane.b32.xlu0 %v410, %s575
        %v577 = vpop.permute.xlu0 %576
        %v578 = vlaneseq
        %v579 = vshrl.u32 %v578, 7
        %v580 = vsub.s32 2, %v579
        %v581 = vrot.slane %v307, %v580
        %583 = vbcast.lane.b32.xlu0 %v581, 256
        %v584 = vpop.permute.xlu0 %583
        %s586 = sor.u32 256, 8
        %587 = vbcast.lane.b32.xlu0 %v581, %s586
        %v588 = vpop.permute.xlu0 %587
        %s590 = sor.u32 256, 1
        %591 = vbcast.lane.b32.xlu0 %v581, %s590
        %v592 = vpop.permute.xlu0 %591
        %s594 = sor.u32 256, 9
        %595 = vbcast.lane.b32.xlu0 %v581, %s594
        %v596 = vpop.permute.xlu0 %595
        %s598 = sor.u32 256, 2
        %599 = vbcast.lane.b32.xlu0 %v581, %s598
        %v600 = vpop.permute.xlu0 %599
        %s602 = sor.u32 256, 10
        %603 = vbcast.lane.b32.xlu0 %v581, %s602
        %v604 = vpop.permute.xlu0 %603
        %v605 = vlaneseq
        %v606 = vshrl.u32 %v605, 7
        %v607 = vsub.s32 3, %v606
        %v608 = vrot.slane %v307, %v607
        %610 = vbcast.lane.b32.xlu0 %v608, 256
        %v611 = vpop.permute.xlu0 %610
        %s613 = sor.u32 256, 8
        %614 = vbcast.lane.b32.xlu0 %v608, %s613
        %v615 = vpop.permute.xlu0 %614
        %s617 = sor.u32 256, 1
        %618 = vbcast.lane.b32.xlu0 %v608, %s617
        %v619 = vpop.permute.xlu0 %618
        %s621 = sor.u32 256, 9
        %622 = vbcast.lane.b32.xlu0 %v608, %s621
        %v623 = vpop.permute.xlu0 %622
        %s625 = sor.u32 256, 2
        %626 = vbcast.lane.b32.xlu0 %v608, %s625
        %v627 = vpop.permute.xlu0 %626
        %s629 = sor.u32 256, 10
        %630 = vbcast.lane.b32.xlu0 %v608, %s629
        %v631 = vpop.permute.xlu0 %630
        %vm632 = vcmask 7168
        %v633 = vsel %vm632, %v314, %v421
        %v634 = vsel %vm632, %v318, %v425
        %v635 = vsel %vm632, %v325, %v429
        %v636 = vsel %vm632, %v329, %v433
        %v637 = vsel %vm632, %v336, %v437
        %v638 = vsel %vm632, %v340, %v441
        %v639 = vsel %vm632, %v347, %v445
        %v640 = vsel %vm632, %v351, %v449
        %v641 = vsel %vm632, %v358, %v453
        %v642 = vsel %vm632, %v362, %v457
        %v643 = vsel %vm632, %v369, %v461
        %v644 = vsel %vm632, %v373, %v465
        %v645 = vsel %vm632, %v380, %v469
        %v646 = vsel %vm632, %v384, %v473
        %v647 = vsel %vm632, %v391, %v477
        %v648 = vsel %vm632, %v395, %v481
        %v649 = vsel %vm632, %v402, %v485
        %v650 = vsel %vm632, %v406, %v489
        %v651 = vsel %vm632, %v413, %v493
        %v652 = vsel %vm632, %v417, %v497
        %vm653 = vcmask 15360
        %v654 = vsel %vm653, %v633, %v501
        %v655 = vsel %vm653, %v634, %v505
        %v656 = vsel %vm653, %v635, %v509
        %v657 = vsel %vm653, %v636, %v513
        %v658 = vsel %vm653, %v637, %v517
        %v659 = vsel %vm653, %v638, %v521
        %v660 = vsel %vm653, %v639, %v525
        %v661 = vsel %vm653, %v640, %v529
        %v662 = vsel %vm653, %v641, %v533
        %v663 = vsel %vm653, %v642, %v537
        %v664 = vsel %vm653, %v643, %v541
        %v665 = vsel %vm653, %v644, %v545
        %v666 = vsel %vm653, %v645, %v549
        %v667 = vsel %vm653, %v646, %v553
        %v668 = vsel %vm653, %v647, %v557
        %v669 = vsel %vm653, %v648, %v561
        %v670 = vsel %vm653, %v649, %v565
        %v671 = vsel %vm653, %v650, %v569
        %v672 = vsel %vm653, %v651, %v573
        %v673 = vsel %vm653, %v652, %v577
        %vm674 = vcmask 23552
        %v675 = vsel %vm674, %v654, %v325
        %v676 = vsel %vm674, %v655, %v329
        %v677 = vsel %vm674, %v656, %v336
        %v678 = vsel %vm674, %v657, %v340
        %v679 = vsel %vm674, %v658, %v347
        %v680 = vsel %vm674, %v659, %v351
        %v681 = vsel %vm674, %v660, %v358
        %v682 = vsel %vm674, %v661, %v362
        %v683 = vsel %vm674, %v662, %v369
        %v684 = vsel %vm674, %v663, %v373
        %v685 = vsel %vm674, %v664, %v380
        %v686 = vsel %vm674, %v665, %v384
        %v687 = vsel %vm674, %v666, %v391
        %v688 = vsel %vm674, %v667, %v395
        %v689 = vsel %vm674, %v668, %v402
        %v690 = vsel %vm674, %v669, %v406
        %v691 = vsel %vm674, %v670, %v413
        %v692 = vsel %vm674, %v671, %v417
        %v693 = vsel %vm674, %v672, %v584
        %v694 = vsel %vm674, %v673, %v588
        %vm695 = vcmask 31744
        %v696 = vsel %vm695, %v675, %v429
        %v697 = vsel %vm695, %v676, %v433
        %v698 = vsel %vm695, %v677, %v437
        %v699 = vsel %vm695, %v678, %v441
        %v700 = vsel %vm695, %v679, %v445
        %v701 = vsel %vm695, %v680, %v449
        %v702 = vsel %vm695, %v681, %v453
        %v703 = vsel %vm695, %v682, %v457
        %v704 = vsel %vm695, %v683, %v461
        %v705 = vsel %vm695, %v684, %v465
        %v706 = vsel %vm695, %v685, %v469
        %v707 = vsel %vm695, %v686, %v473
        %v708 = vsel %vm695, %v687, %v477
        %v709 = vsel %vm695, %v688, %v481
        %v710 = vsel %vm695, %v689, %v485
        %v711 = vsel %vm695, %v690, %v489
        %v712 = vsel %vm695, %v691, %v493
        %v713 = vsel %vm695, %v692, %v497
        %v714 = vsel %vm695, %v693, %v592
        %v715 = vsel %vm695, %v694, %v596
        %vm716 = vcmask 39936
        %v717 = vsel %vm716, %v696, %v509
        %v718 = vsel %vm716, %v697, %v513
        %v719 = vsel %vm716, %v698, %v517
        %v720 = vsel %vm716, %v699, %v521
        %v721 = vsel %vm716, %v700, %v525
        %v722 = vsel %vm716, %v701, %v529
        %v723 = vsel %vm716, %v702, %v533
        %v724 = vsel %vm716, %v703, %v537
        %v725 = vsel %vm716, %v704, %v541
        %v726 = vsel %vm716, %v705, %v545
        %v727 = vsel %vm716, %v706, %v549
        %v728 = vsel %vm716, %v707, %v553
        %v729 = vsel %vm716, %v708, %v557
        %v730 = vsel %vm716, %v709, %v561
        %v731 = vsel %vm716, %v710, %v565
        %v732 = vsel %vm716, %v711, %v569
        %v733 = vsel %vm716, %v712, %v573
        %v734 = vsel %vm716, %v713, %v577
        %v735 = vsel %vm716, %v714, %v600
        %v736 = vsel %vm716, %v715, %v604
        %vm737 = vcmask 48128
        %v738 = vsel %vm737, %v717, %v336
        %v739 = vsel %vm737, %v718, %v340
        %v740 = vsel %vm737, %v719, %v347
        %v741 = vsel %vm737, %v720, %v351
        %v742 = vsel %vm737, %v721, %v358
        %v743 = vsel %vm737, %v722, %v362
        %v744 = vsel %vm737, %v723, %v369
        %v745 = vsel %vm737, %v724, %v373
        %v746 = vsel %vm737, %v725, %v380
        %v747 = vsel %vm737, %v726, %v384
        %v748 = vsel %vm737, %v727, %v391
        %v749 = vsel %vm737, %v728, %v395
        %v750 = vsel %vm737, %v729, %v402
        %v751 = vsel %vm737, %v730, %v406
        %v752 = vsel %vm737, %v731, %v413
        %v753 = vsel %vm737, %v732, %v417
        %v754 = vsel %vm737, %v733, %v584
        %v755 = vsel %vm737, %v734, %v588
        %v756 = vsel %vm737, %v735, %v611
        %v757 = vsel %vm737, %v736, %v615
        %vm758 = vcmask 56320
        %v759 = vsel %vm758, %v738, %v437
        %v760 = vsel %vm758, %v739, %v441
        %v761 = vsel %vm758, %v740, %v445
        %v762 = vsel %vm758, %v741, %v449
        %v763 = vsel %vm758, %v742, %v453
        %v764 = vsel %vm758, %v743, %v457
        %v765 = vsel %vm758, %v744, %v461
        %v766 = vsel %vm758, %v745, %v465
        %v767 = vsel %vm758, %v746, %v469
        %v768 = vsel %vm758, %v747, %v473
        %v769 = vsel %vm758, %v748, %v477
        %v770 = vsel %vm758, %v749, %v481
        %v771 = vsel %vm758, %v750, %v485
        %v772 = vsel %vm758, %v751, %v489
        %v773 = vsel %vm758, %v752, %v493
        %v774 = vsel %vm758, %v753, %v497
        %v775 = vsel %vm758, %v754, %v592
        %v776 = vsel %vm758, %v755, %v596
        %v777 = vsel %vm758, %v756, %v619
        %v778 = vsel %vm758, %v757, %v623
        %vm779 = vcmask 64512
        %v780 = vsel %vm779, %v759, %v517
        %v781 = vsel %vm779, %v760, %v521
        %v782 = vsel %vm779, %v761, %v525
        %v783 = vsel %vm779, %v762, %v529
        %v784 = vsel %vm779, %v763, %v533
        %v785 = vsel %vm779, %v764, %v537
        %v786 = vsel %vm779, %v765, %v541
        %v787 = vsel %vm779, %v766, %v545
        %v788 = vsel %vm779, %v767, %v549
        %v789 = vsel %vm779, %v768, %v553
        %v790 = vsel %vm779, %v769, %v557
        %v791 = vsel %vm779, %v770, %v561
        %v792 = vsel %vm779, %v771, %v565
        %v793 = vsel %vm779, %v772, %v569
        %v794 = vsel %vm779, %v773, %v573
        %v795 = vsel %vm779, %v774, %v577
        %v796 = vsel %vm779, %v775, %v600
        %v797 = vsel %vm779, %v776, %v604
        %v798 = vsel %vm779, %v777, %v627
        %v799 = vsel %vm779, %v778, %v631
        %v800 = vld [vmem:[%s1] sm:$0xff]
        %v801 = vld [vmem:[%s1 + $0x8] sm:$0x1]
        %v802 = vld [vmem:[%s2] sm:$0x1]
        %v804 = vlaneseq
        %v805 = vshrl.u32 %v804, 7
        %v806 = vsub.s32 0, %v805
        %v807 = vrot.slane %v802, %v806
        %vm809 = vcmask 72704
        %v811 = vsel %vm809, %v780, 0
        %v814 = vsel %vm809, %v781, 0
        %v817 = vsel %vm809, %v782, 0
        %v820 = vsel %vm809, %v783, 0
        %v823 = vsel %vm809, %v784, 0
        %v826 = vsel %vm809, %v785, 0
        %v829 = vsel %vm809, %v786, 0
        %v832 = vsel %vm809, %v787, 0
        %v835 = vsel %vm809, %v788, 0
        %v838 = vsel %vm809, %v789, 0
        %v841 = vsel %vm809, %v790, 0
        %v844 = vsel %vm809, %v791, 0
        %v847 = vsel %vm809, %v792, 0
        %v850 = vsel %vm809, %v793, 0
        %v853 = vsel %vm809, %v794, 0
        %v856 = vsel %vm809, %v795, 0
        %v859 = vsel %vm809, %v796, 0
        %v862 = vsel %vm809, %v797, 0
        %v865 = vsel %vm809, %v798, 0
        %v868 = vsel %vm809, %v799, 0
        %vm870 = vcmask 1040384
        %v872 = vsel %vm870, %v801, 0
        %874 = vmatprep.subr.mxu0 0.0
        %875 = vmatpush1.msra.mxu0 %v800
        %876 = vmatprep.subr.mxu0 0.0
        %877 = vmatpush1.msra.mxu0 %v872
        %878 = vmatprep.subr.mxu0 0.0
        %879 = vmatpush1.msra.mxu0 0.0
        %880 = vmatprep.subr.mxu0 0.0
        %881 = vmatpush1.msra.mxu0 0.0
        %882 = vmatprep.subr.mxu0 0.0
        %883 = vmatpush1.msra.mxu0 0.0
        %884 = vmatprep.subr.mxu0 0.0
        %885 = vmatpush1.msra.mxu0 0.0
        %886 = vmatprep.subr.mxu0 0.0
        %887 = vmatpush1.msra.mxu0 0.0
        %888 = vmatprep.subr.mxu0 0.0
        %889 = vmatpush1.msra.mxu0 0.0
        %890 = vmatprep.subr.mxu0 0.0
        %891 = vmatpush1.msra.mxu0 0.0
        %892 = vmatprep.subr.mxu0 0.0
        %893 = vmatpush1.msra.mxu0 0.0
        %894 = vmatprep.subr.mxu0 0.0
        %895 = vmatpush1.msra.mxu0 0.0
        %896 = vmatprep.subr.mxu0 0.0
        %897 = vmatpush1.msra.mxu0 0.0
        %898 = vmatprep.subr.mxu0 0.0
        %899 = vmatpush1.msra.mxu0 0.0
        %900 = vmatprep.subr.mxu0 0.0
        %901 = vmatpush1.msra.mxu0 0.0
        %902 = vmatprep.subr.mxu0 0.0
        %903 = vmatpush1.msra.mxu0 0.0
        %904 = vmatprep.subr.mxu0 0.0
        %905 = vmatpush1.msra.mxu0 0.0
        %906 = vmatprep.subr.mxu0 0.0
        %907 = vmatpush1.msra.mxu0 0.0
        %908 = vmatprep.subr.mxu0 0.0
        %909 = vmatpush1.msra.mxu0 0.0
        %910 = vmatprep.subr.mxu0 0.0
        %911 = vmatpush1.msra.mxu0 0.0
        %912 = vmatprep.subr.mxu0 0.0
        %913 = vmatpush1.msra.mxu0 0.0
        %914 = vmatprep.subr.mxu0 0.0
        %915 = vmatpush1.msra.mxu0 0.0
        %916 = vmatprep.subr.mxu0 0.0
        %917 = vmatpush1.msra.mxu0 0.0
        %918 = vmatprep.subr.mxu0 0.0
        %919 = vmatpush1.msra.mxu0 0.0
        %920 = vmatprep.subr.mxu0 0.0
        %921 = vmatpush1.msra.mxu0 0.0
        %922 = vmatprep.subr.mxu0 0.0
        %923 = vmatpush1.msra.mxu0 0.0
        %924 = vmatprep.subr.mxu0 0.0
        %925 = vmatpush1.msra.mxu0 0.0
        %926 = vmatprep.subr.mxu0 0.0
        %927 = vmatpush1.msra.mxu0 0.0
        %928 = vmatprep.subr.mxu0 0.0
        %929 = vmatpush1.msra.mxu0 0.0
        %930 = vmatprep.subr.mxu0 0.0
        %931 = vmatpush1.msra.mxu0 0.0
        %932 = vmatprep.subr.mxu0 0.0
        %933 = vmatpush1.msra.mxu0 0.0
        %934 = vmatprep.subr.mxu0 0.0
        %935 = vmatpush1.msra.mxu0 0.0
        %936 = vmatprep.subr.mxu0 0.0
        %937 = vmatpush1.msra.mxu0 0.0
        %938 = vmatprep.mubr.f32.mxu0 0.0
        %939 = vmatmul.mubr.f32.gmra.mrb[0].mxu0 %v811
        %v940 = vpop.f32.mrb[0].mxu0
        %v941 = vadd.f32 %v807, %v940
        %v942 = vpop.f32.mrb[0].mxu0
        %943 = vmatprep.mubr.f32.mxu0 0.0
        %944 = vmatmul.mubr.f32.gmra.mrb[0].mxu0 %v814
        %v945 = vpop.f32.mrb[0].mxu0
        %v946 = vadd.f32 %v807, %v945
        %v947 = vpop.f32.mrb[0].mxu0
        %948 = vmatprep.mubr.f32.mxu0 0.0
        %949 = vmatmul.mubr.f32.gmra.mrb[0].mxu0 %v817
        %v950 = vpop.f32.mrb[0].mxu0
        %v951 = vadd.f32 %v807, %v950
        %v952 = vpop.f32.mrb[0].mxu0
        %953 = vmatprep.mubr.f32.mxu0 0.0
        %954 = vmatmul.mubr.f32.gmra.mrb[0].mxu0 %v820
        %v955 = vpop.f32.mrb[0].mxu0
        %v956 = vadd.f32 %v807, %v955
        %v957 = vpop.f32.mrb[0].mxu0
        %958 = vmatprep.mubr.f32.mxu0 0.0
        %959 = vmatmul.mubr.f32.gmra.mrb[0].mxu0 %v823
        %v960 = vpop.f32.mrb[0].mxu0
        %v961 = vadd.f32 %v807, %v960
        %v962 = vpop.f32.mrb[0].mxu0
        %963 = vmatprep.mubr.f32.mxu0 0.0
        %964 = vmatmul.mubr.f32.gmra.mrb[0].mxu0 %v826
        %v965 = vpop.f32.mrb[0].mxu0
        %v966 = vadd.f32 %v807, %v965
        %v967 = vpop.f32.mrb[0].mxu0
        %968 = vmatprep.mubr.f32.mxu0 0.0
        %969 = vmatmul.mubr.f32.gmra.mrb[0].mxu0 %v829
        %v970 = vpop.f32.mrb[0].mxu0
        %v971 = vadd.f32 %v807, %v970
        %v972 = vpop.f32.mrb[0].mxu0
        %973 = vmatprep.mubr.f32.mxu0 0.0
        %974 = vmatmul.mubr.f32.gmra.mrb[0].mxu0 %v832
        %v975 = vpop.f32.mrb[0].mxu0
        %v976 = vadd.f32 %v807, %v975
        %v977 = vpop.f32.mrb[0].mxu0
        %978 = vmatprep.mubr.f32.mxu0 0.0
        %979 = vmatmul.mubr.f32.gmra.mrb[0].mxu0 %v835
        %v980 = vpop.f32.mrb[0].mxu0
        %v981 = vadd.f32 %v807, %v980
        %v982 = vpop.f32.mrb[0].mxu0
        %983 = vmatprep.mubr.f32.mxu0 0.0
        %984 = vmatmul.mubr.f32.gmra.mrb[0].mxu0 %v838
        %v985 = vpop.f32.mrb[0].mxu0
        %v986 = vadd.f32 %v807, %v985
        %v987 = vpop.f32.mrb[0].mxu0
        %988 = vmatprep.mubr.f32.mxu0 0.0
        %989 = vmatmul.mubr.f32.gmra.mrb[0].mxu0 %v841
        %v990 = vpop.f32.mrb[0].mxu0
        %v991 = vadd.f32 %v807, %v990
        %v992 = vpop.f32.mrb[0].mxu0
        %993 = vmatprep.mubr.f32.mxu0 0.0
        %994 = vmatmul.mubr.f32.gmra.mrb[0].mxu0 %v844
        %v995 = vpop.f32.mrb[0].mxu0
        %v996 = vadd.f32 %v807, %v995
        %v997 = vpop.f32.mrb[0].mxu0
        %998 = vmatprep.mubr.f32.mxu0 0.0
        %999 = vmatmul.mubr.f32.gmra.mrb[0].mxu0 %v847
        %v1000 = vpop.f32.mrb[0].mxu0
        %v1001 = vadd.f32 %v807, %v1000
        %v1002 = vpop.f32.mrb[0].mxu0
        %1003 = vmatprep.mubr.f32.mxu0 0.0
        %1004 = vmatmul.mubr.f32.gmra.mrb[0].mxu0 %v850
        %v1005 = vpop.f32.mrb[0].mxu0
        %v1006 = vadd.f32 %v807, %v1005
        %v1007 = vpop.f32.mrb[0].mxu0
        %1008 = vmatprep.mubr.f32.mxu0 0.0
        %1009 = vmatmul.mubr.f32.gmra.mrb[0].mxu0 %v853
        %v1010 = vpop.f32.mrb[0].mxu0
        %v1011 = vadd.f32 %v807, %v1010
        %v1012 = vpop.f32.mrb[0].mxu0
        %1013 = vmatprep.mubr.f32.mxu0 0.0
        %1014 = vmatmul.mubr.f32.gmra.mrb[0].mxu0 %v856
        %v1015 = vpop.f32.mrb[0].mxu0
        %v1016 = vadd.f32 %v807, %v1015
        %v1017 = vpop.f32.mrb[0].mxu0
        %1018 = vmatprep.mubr.f32.mxu0 0.0
        %1019 = vmatmul.mubr.f32.gmra.mrb[0].mxu0 %v859
        %v1020 = vpop.f32.mrb[0].mxu0
        %v1021 = vadd.f32 %v807, %v1020
        %v1022 = vpop.f32.mrb[0].mxu0
        %1023 = vmatprep.mubr.f32.mxu0 0.0
        %1024 = vmatmul.mubr.f32.gmra.mrb[0].mxu0 %v862
        %v1025 = vpop.f32.mrb[0].mxu0
        %v1026 = vadd.f32 %v807, %v1025
        %v1027 = vpop.f32.mrb[0].mxu0
        %1028 = vmatprep.mubr.f32.mxu0 0.0
        %1029 = vmatmul.mubr.f32.gmra.mrb[0].mxu0 %v865
        %v1030 = vpop.f32.mrb[0].mxu0
        %v1031 = vadd.f32 %v807, %v1030
        %v1032 = vpop.f32.mrb[0].mxu0
        %1033 = vmatprep.mubr.f32.mxu0 0.0
        %1034 = vmatmul.mubr.f32.gmra.mrb[0].mxu0 %v868
        %v1035 = vpop.f32.mrb[0].mxu0
        %v1036 = vadd.f32 %v807, %v1035
        %v1037 = vpop.f32.mrb[0].mxu0
        %1038 = vdwg.mxu0
        %v1039 = vmax.f32 %v941, 0.0
        %v1040 = vmax.f32 %v946, 0.0
        %v1041 = vmax.f32 %v951, 0.0
        %v1042 = vmax.f32 %v956, 0.0
        %v1043 = vmax.f32 %v961, 0.0
        %v1044 = vmax.f32 %v966, 0.0
        %v1045 = vmax.f32 %v971, 0.0
        %v1046 = vmax.f32 %v976, 0.0
        %v1047 = vmax.f32 %v981, 0.0
        %v1048 = vmax.f32 %v986, 0.0
        %v1049 = vmax.f32 %v991, 0.0
        %v1050 = vmax.f32 %v996, 0.0
        %v1051 = vmax.f32 %v1001, 0.0
        %v1052 = vmax.f32 %v1006, 0.0
        %v1053 = vmax.f32 %v1011, 0.0
        %v1054 = vmax.f32 %v1016, 0.0
        %v1055 = vmax.f32 %v1021, 0.0
        %v1056 = vmax.f32 %v1026, 0.0
        %v1057 = vmax.f32 %v1031, 0.0
        %v1058 = vmax.f32 %v1036, 0.0
        %v1059 = vpack.c.bf16 %v1040, %v1039
        %v1060 = vpack.c.bf16 %v1042, %v1041
        %v1061 = vpack.c.bf16 %v1044, %v1043
        %v1062 = vpack.c.bf16 %v1046, %v1045
        %v1063 = vpack.c.bf16 %v1048, %v1047
        %v1064 = vpack.c.bf16 %v1050, %v1049
        %v1065 = vpack.c.bf16 %v1052, %v1051
        %v1066 = vpack.c.bf16 %v1054, %v1053
        %v1067 = vpack.c.bf16 %v1056, %v1055
        %v1068 = vpack.c.bf16 %v1058, %v1057
        %v1079 = vunpack.c.l.b16 %v1059
        %v1080 = vunpack.c.h.b16 %v1059
        %v1081 = vunpack.c.l.b16 %v1060
        %v1082 = vunpack.c.h.b16 %v1060
        %v1083 = vunpack.c.l.b16 %v1061
        %v1084 = vunpack.c.h.b16 %v1061
        %v1085 = vunpack.c.l.b16 %v1062
        %v1086 = vunpack.c.h.b16 %v1062
        %v1087 = vunpack.c.l.b16 %v1063
        %v1088 = vunpack.c.h.b16 %v1063
        %v1089 = vunpack.c.l.b16 %v1064
        %v1090 = vunpack.c.h.b16 %v1064
        %v1091 = vunpack.c.l.b16 %v1065
        %v1092 = vunpack.c.h.b16 %v1065
        %v1093 = vunpack.c.l.b16 %v1066
        %v1094 = vunpack.c.h.b16 %v1066
        %v1095 = vunpack.c.l.b16 %v1067
        %v1096 = vunpack.c.h.b16 %v1067
        %v1097 = vunpack.c.l.b16 %v1068
        %v1098 = vunpack.c.h.b16 %v1068
        %v1099 = vpack.c.b16 %v1079, %v1079
        %v1100 = vpack.c.b16 %v1080, %v1080
        %v1101 = vpack.c.b16 %v1081, %v1081
        %v1102 = vpack.c.b16 %v1082, %v1082
        %v1103 = vpack.c.b16 %v1083, %v1083
        %v1104 = vpack.c.b16 %v1084, %v1084
        %v1105 = vpack.c.b16 %v1085, %v1085
        %v1106 = vpack.c.b16 %v1086, %v1086
        %v1107 = vpack.c.b16 %v1087, %v1087
        %v1108 = vpack.c.b16 %v1088, %v1088
        %v1109 = vpack.c.b16 %v1089, %v1089
        %v1110 = vpack.c.b16 %v1090, %v1090
        %v1111 = vpack.c.b16 %v1091, %v1091
        %v1112 = vpack.c.b16 %v1092, %v1092
        %v1113 = vpack.c.b16 %v1093, %v1093
        %v1114 = vpack.c.b16 %v1094, %v1094
        %v1115 = vpack.c.b16 %v1095, %v1095
        %v1116 = vpack.c.b16 %v1096, %v1096
        %v1117 = vpack.c.b16 %v1097, %v1097
        %v1118 = vpack.c.b16 %v1098, %v1098
        %vm1119 = vsmask.f32 256
        %vm1120 = vsmask.f32 4368
        %vm1121 = vmor %vm1119, %vm1120
        %v1123 = vshrl.u32 %v1099, 16
        %v1125 = vrot.slane %v1123, 7
        %v1126 = vshll.u32 %v1099, 16
        %v1128 = vor.u32 %v1125, %v1126
        %v1129 = vrot.slane %v1125, 4
        %v1131 = vshrl.u32 %v1100, 16
        %v1133 = vrot.slane %v1131, 7
        %v1134 = vshll.u32 %v1100, 16
        %v1136 = vor.u32 %v1133, %v1134
        %v1137 = vsel %vm1121, %v1129, %v1136
        %v1138 = vrot.slane %v1133, 4
        %v1140 = vshrl.u32 %v1101, 16
        %v1142 = vrot.slane %v1140, 7
        %v1143 = vshll.u32 %v1101, 16
        %v1145 = vor.u32 %v1142, %v1143
        %v1146 = vrot.slane %v1142, 4
        %v1148 = vshrl.u32 %v1102, 16
        %v1150 = vrot.slane %v1148, 7
        %v1151 = vshll.u32 %v1102, 16
        %v1153 = vor.u32 %v1150, %v1151
        %v1154 = vsel %vm1121, %v1146, %v1153
        %v1155 = vrot.slane %v1150, 4
        %v1157 = vshrl.u32 %v1103, 16
        %v1159 = vrot.slane %v1157, 7
        %v1160 = vshll.u32 %v1103, 16
        %v1162 = vor.u32 %v1159, %v1160
        %v1163 = vrot.slane %v1159, 4
        %v1165 = vshrl.u32 %v1104, 16
        %v1167 = vrot.slane %v1165, 7
        %v1168 = vshll.u32 %v1104, 16
        %v1170 = vor.u32 %v1167, %v1168
        %v1171 = vsel %vm1121, %v1163, %v1170
        %v1172 = vrot.slane %v1167, 4
        %v1174 = vshrl.u32 %v1105, 16
        %v1176 = vrot.slane %v1174, 7
        %v1177 = vshll.u32 %v1105, 16
        %v1179 = vor.u32 %v1176, %v1177
        %v1180 = vrot.slane %v1176, 4
        %v1182 = vshrl.u32 %v1106, 16
        %v1184 = vrot.slane %v1182, 7
        %v1185 = vshll.u32 %v1106, 16
        %v1187 = vor.u32 %v1184, %v1185
        %v1188 = vsel %vm1121, %v1180, %v1187
        %v1189 = vrot.slane %v1184, 4
        %v1191 = vshrl.u32 %v1107, 16
        %v1193 = vrot.slane %v1191, 7
        %v1194 = vshll.u32 %v1107, 16
        %v1196 = vor.u32 %v1193, %v1194
        %v1197 = vrot.slane %v1193, 4
        %v1199 = vshrl.u32 %v1108, 16
        %v1201 = vrot.slane %v1199, 7
        %v1202 = vshll.u32 %v1108, 16
        %v1204 = vor.u32 %v1201, %v1202
        %v1205 = vsel %vm1121, %v1197, %v1204
        %v1206 = vrot.slane %v1201, 4
        %v1208 = vshrl.u32 %v1109, 16
        %v1210 = vrot.slane %v1208, 7
        %v1211 = vshll.u32 %v1109, 16
        %v1213 = vor.u32 %v1210, %v1211
        %v1214 = vrot.slane %v1210, 4
        %v1216 = vshrl.u32 %v1110, 16
        %v1218 = vrot.slane %v1216, 7
        %v1219 = vshll.u32 %v1110, 16
        %v1221 = vor.u32 %v1218, %v1219
        %v1222 = vsel %vm1121, %v1214, %v1221
        %v1223 = vrot.slane %v1218, 4
        %v1225 = vshrl.u32 %v1111, 16
        %v1227 = vrot.slane %v1225, 7
        %v1228 = vshll.u32 %v1111, 16
        %v1230 = vor.u32 %v1227, %v1228
        %v1231 = vrot.slane %v1227, 4
        %v1233 = vshrl.u32 %v1112, 16
        %v1235 = vrot.slane %v1233, 7
        %v1236 = vshll.u32 %v1112, 16
        %v1238 = vor.u32 %v1235, %v1236
        %v1239 = vsel %vm1121, %v1231, %v1238
        %v1240 = vrot.slane %v1235, 4
        %v1242 = vshrl.u32 %v1113, 16
        %v1244 = vrot.slane %v1242, 7
        %v1245 = vshll.u32 %v1113, 16
        %v1247 = vor.u32 %v1244, %v1245
        %v1248 = vrot.slane %v1244, 4
        %v1250 = vshrl.u32 %v1114, 16
        %v1252 = vrot.slane %v1250, 7
        %v1253 = vshll.u32 %v1114, 16
        %v1255 = vor.u32 %v1252, %v1253
        %v1256 = vsel %vm1121, %v1248, %v1255
        %v1257 = vrot.slane %v1252, 4
        %v1259 = vshrl.u32 %v1115, 16
        %v1261 = vrot.slane %v1259, 7
        %v1262 = vshll.u32 %v1115, 16
        %v1264 = vor.u32 %v1261, %v1262
        %v1265 = vrot.slane %v1261, 4
        %v1267 = vshrl.u32 %v1116, 16
        %v1269 = vrot.slane %v1267, 7
        %v1270 = vshll.u32 %v1116, 16
        %v1272 = vor.u32 %v1269, %v1270
        %v1273 = vsel %vm1121, %v1265, %v1272
        %v1274 = vrot.slane %v1269, 4
        %v1276 = vshrl.u32 %v1117, 16
        %v1278 = vrot.slane %v1276, 7
        %v1279 = vshll.u32 %v1117, 16
        %v1281 = vor.u32 %v1278, %v1279
        %v1282 = vrot.slane %v1278, 4
        %v1284 = vshrl.u32 %v1118, 16
        %v1286 = vrot.slane %v1284, 7
        %v1287 = vshll.u32 %v1118, 16
        %v1289 = vor.u32 %v1286, %v1287
        %v1290 = vsel %vm1121, %v1282, %v1289
        %v1291 = vrot.slane %v1286, 4
        %vm1322 = vcmask 257024
        %vm1323 = vsmask.f32 7938
        %vm1324 = vmand %vm1322, %vm1323
        %v1325 = vld [vmem:[#allocation2] sm:$0xf]
        %v1326 = vsel %vm1324, %v1128, %v1325
        %1327 = vst [vmem:[#allocation2] sm:$0xf] %v1326
        %vm1328 = vcmask 257024
        %1329 = vst.msk [vmem:[#allocation2 + $0x4] sm:$0xf] %vm1328, %v1137
        %vm1330 = vcmask 253952
        %vm1331 = vmand %vm1330, %vm1119
        %v1332 = vld [vmem:[#allocation2 + $0x8] sm:$0x1]
        %v1333 = vsel %vm1331, %v1138, %v1332
        %1334 = vst [vmem:[#allocation2 + $0x8] sm:$0x1] %v1333
        %v1335 = vld [vmem:[#allocation2 + $0xc] sm:$0xf]
        %v1336 = vsel %vm1324, %v1145, %v1335
        %1337 = vst [vmem:[#allocation2 + $0xc] sm:$0xf] %v1336
        %1338 = vst.msk [vmem:[#allocation2 + $0x10] sm:$0xf] %vm1328, %v1154
        %v1339 = vld [vmem:[#allocation2 + $0x14] sm:$0x1]
        %v1340 = vsel %vm1331, %v1155, %v1339
        %1341 = vst [vmem:[#allocation2 + $0x14] sm:$0x1] %v1340
        %v1342 = vld [vmem:[#allocation2 + $0x18] sm:$0xf]
        %v1343 = vsel %vm1324, %v1162, %v1342
        %1344 = vst [vmem:[#allocation2 + $0x18] sm:$0xf] %v1343
        %1345 = vst.msk [vmem:[#allocation2 + $0x1c] sm:$0xf] %vm1328, %v1171
        %v1346 = vld [vmem:[#allocation2 + $0x20] sm:$0x1]
        %v1347 = vsel %vm1331, %v1172, %v1346
        %1348 = vst [vmem:[#allocation2 + $0x20] sm:$0x1] %v1347
        %v1349 = vld [vmem:[#allocation2 + $0x24] sm:$0xf]
        %v1350 = vsel %vm1324, %v1179, %v1349
        %1351 = vst [vmem:[#allocation2 + $0x24] sm:$0xf] %v1350
        %1352 = vst.msk [vmem:[#allocation2 + $0x28] sm:$0xf] %vm1328, %v1188
        %v1353 = vld [vmem:[#allocation2 + $0x2c] sm:$0x1]
        %v1354 = vsel %vm1331, %v1189, %v1353
        %1355 = vst [vmem:[#allocation2 + $0x2c] sm:$0x1] %v1354
        %v1356 = vld [vmem:[#allocation2 + $0x30] sm:$0xf]
        %v1357 = vsel %vm1324, %v1196, %v1356
        %1358 = vst [vmem:[#allocation2 + $0x30] sm:$0xf] %v1357
        %1359 = vst.msk [vmem:[#allocation2 + $0x34] sm:$0xf] %vm1328, %v1205
        %v1360 = vld [vmem:[#allocation2 + $0x38] sm:$0x1]
        %v1361 = vsel %vm1331, %v1206, %v1360
        %1362 = vst [vmem:[#allocation2 + $0x38] sm:$0x1] %v1361
        %v1363 = vld [vmem:[#allocation2 + $0x3c] sm:$0xf]
        %v1364 = vsel %vm1324, %v1213, %v1363
        %1365 = vst [vmem:[#allocation2 + $0x3c] sm:$0xf] %v1364
        %1366 = vst.msk [vmem:[#allocation2 + $0x40] sm:$0xf] %vm1328, %v1222
        %v1367 = vld [vmem:[#allocation2 + $0x44] sm:$0x1]
        %v1368 = vsel %vm1331, %v1223, %v1367
        %1369 = vst [vmem:[#allocation2 + $0x44] sm:$0x1] %v1368
        %v1370 = vld [vmem:[#allocation2 + $0x48] sm:$0xf]
        %v1371 = vsel %vm1324, %v1230, %v1370
        %1372 = vst [vmem:[#allocation2 + $0x48] sm:$0xf] %v1371
        %1373 = vst.msk [vmem:[#allocation2 + $0x4c] sm:$0xf] %vm1328, %v1239
        %v1374 = vld [vmem:[#allocation2 + $0x50] sm:$0x1]
        %v1375 = vsel %vm1331, %v1240, %v1374
        %1376 = vst [vmem:[#allocation2 + $0x50] sm:$0x1] %v1375
        %v1377 = vld [vmem:[#allocation2 + $0x54] sm:$0xf]
        %v1378 = vsel %vm1324, %v1247, %v1377
        %1379 = vst [vmem:[#allocation2 + $0x54] sm:$0xf] %v1378
        %1380 = vst.msk [vmem:[#allocation2 + $0x58] sm:$0xf] %vm1328, %v1256
        %v1381 = vld [vmem:[#allocation2 + $0x5c] sm:$0x1]
        %v1382 = vsel %vm1331, %v1257, %v1381
        %1383 = vst [vmem:[#allocation2 + $0x5c] sm:$0x1] %v1382
        %v1384 = vld [vmem:[#allocation2 + $0x60] sm:$0xf]
        %v1385 = vsel %vm1324, %v1264, %v1384
        %1386 = vst [vmem:[#allocation2 + $0x60] sm:$0xf] %v1385
        %1387 = vst.msk [vmem:[#allocation2 + $0x64] sm:$0xf] %vm1328, %v1273
        %v1388 = vld [vmem:[#allocation2 + $0x68] sm:$0x1]
        %v1389 = vsel %vm1331, %v1274, %v1388
        %1390 = vst [vmem:[#allocation2 + $0x68] sm:$0x1] %v1389
        %v1391 = vld [vmem:[#allocation2 + $0x6c] sm:$0xf]
        %v1392 = vsel %vm1324, %v1281, %v1391
        %1393 = vst [vmem:[#allocation2 + $0x6c] sm:$0xf] %v1392
        %1394 = vst.msk [vmem:[#allocation2 + $0x70] sm:$0xf] %vm1328, %v1290
        %v1395 = vld [vmem:[#allocation2 + $0x74] sm:$0x1]
        %v1396 = vsel %vm1331, %v1291, %v1395
        %1397 = vst [vmem:[#allocation2 + $0x74] sm:$0x1] %v1396
        %v1398 = vld [vmem:[#allocation2] sm:$0x1]
        %v1399 = vsel %vm1331, 0, %v1398
        %1400 = vst [vmem:[#allocation2] sm:$0x1] %v1399
        %v1401 = vld [vmem:[#allocation2 + $0xc] sm:$0x1]
        %v1402 = vsel %vm1331, 0, %v1401
        %1403 = vst [vmem:[#allocation2 + $0xc] sm:$0x1] %v1402
        %v1404 = vld [vmem:[#allocation2 + $0x18] sm:$0x1]
        %v1405 = vsel %vm1331, 0, %v1404
        %1406 = vst [vmem:[#allocation2 + $0x18] sm:$0x1] %v1405
        %v1407 = vld [vmem:[#allocation2 + $0x24] sm:$0x1]
        %v1408 = vsel %vm1331, 0, %v1407
        %1409 = vst [vmem:[#allocation2 + $0x24] sm:$0x1] %v1408
        %v1410 = vld [vmem:[#allocation2 + $0x30] sm:$0x1]
        %v1411 = vsel %vm1331, 0, %v1410
        %1412 = vst [vmem:[#allocation2 + $0x30] sm:$0x1] %v1411
        %v1413 = vld [vmem:[#allocation2 + $0x3c] sm:$0x1]
        %v1414 = vsel %vm1331, 0, %v1413
        %1415 = vst [vmem:[#allocation2 + $0x3c] sm:$0x1] %v1414
        %v1416 = vld [vmem:[#allocation2 + $0x48] sm:$0x1]
        %v1417 = vsel %vm1331, 0, %v1416
        %1418 = vst [vmem:[#allocation2 + $0x48] sm:$0x1] %v1417
        %v1419 = vld [vmem:[#allocation2 + $0x54] sm:$0x1]
        %v1420 = vsel %vm1331, 0, %v1419
        %1421 = vst [vmem:[#allocation2 + $0x54] sm:$0x1] %v1420
        %v1422 = vld [vmem:[#allocation2 + $0x60] sm:$0x1]
        %v1423 = vsel %vm1331, 0, %v1422
        %1424 = vst [vmem:[#allocation2 + $0x60] sm:$0x1] %v1423
        %v1425 = vld [vmem:[#allocation2 + $0x6c] sm:$0x1]
        %v1426 = vsel %vm1331, 0, %v1425
        %1427 = vst [vmem:[#allocation2 + $0x6c] sm:$0x1] %v1426
        %vm1428 = vmand %vm1330, %vm1323
        %v1429 = vld [vmem:[#allocation2 + $0x8] sm:$0x1]
        %v1430 = vsel %vm1428, 0, %v1429
        %1431 = vst [vmem:[#allocation2 + $0x8] sm:$0x1] %v1430
        %v1432 = vld [vmem:[#allocation2 + $0x14] sm:$0x1]
        %v1433 = vsel %vm1428, 0, %v1432
        %1434 = vst [vmem:[#allocation2 + $0x14] sm:$0x1] %v1433
        %v1435 = vld [vmem:[#allocation2 + $0x20] sm:$0x1]
        %v1436 = vsel %vm1428, 0, %v1435
        %1437 = vst [vmem:[#allocation2 + $0x20] sm:$0x1] %v1436
        %v1438 = vld [vmem:[#allocation2 + $0x2c] sm:$0x1]
        %v1439 = vsel %vm1428, 0, %v1438
        %1440 = vst [vmem:[#allocation2 + $0x2c] sm:$0x1] %v1439
        %v1441 = vld [vmem:[#allocation2 + $0x38] sm:$0x1]
        %v1442 = vsel %vm1428, 0, %v1441
        %1443 = vst [vmem:[#allocation2 + $0x38] sm:$0x1] %v1442
        %v1444 = vld [vmem:[#allocation2 + $0x44] sm:$0x1]
        %v1445 = vsel %vm1428, 0, %v1444
        %1446 = vst [vmem:[#allocation2 + $0x44] sm:$0x1] %v1445
        %v1447 = vld [vmem:[#allocation2 + $0x50] sm:$0x1]
        %v1448 = vsel %vm1428, 0, %v1447
        %1449 = vst [vmem:[#allocation2 + $0x50] sm:$0x1] %v1448
        %v1450 = vld [vmem:[#allocation2 + $0x5c] sm:$0x1]
        %v1451 = vsel %vm1428, 0, %v1450
        %1452 = vst [vmem:[#allocation2 + $0x5c] sm:$0x1] %v1451
        %v1453 = vld [vmem:[#allocation2 + $0x68] sm:$0x1]
        %v1454 = vsel %vm1428, 0, %v1453
        %1455 = vst [vmem:[#allocation2 + $0x68] sm:$0x1] %v1454
        %v1456 = vld [vmem:[#allocation2 + $0x74] sm:$0x1]
        %v1457 = vsel %vm1428, 0, %v1456
        %1458 = vst [vmem:[#allocation2 + $0x74] sm:$0x1] %v1457
        %p1459 = scmp.eq.s32.totalorder %s26, 0
        // Predicated region
        $region49: #{tpu_custom_call.1} parent=47 // pred_check
          %p1460 = pneg %p1459
        $region50: #{tpu_custom_call.1} parent=47 // pred_check_branch
          %1462 = sbr.rel (%p1460) target = $region52
        $region51: #{tpu_custom_call.1} parent=47 // pred_region
          %1463 = vst.msk [vmem:[#allocation2] sm:$0xf] %vm1328, 0
          %1464 = vst.msk [vmem:[#allocation2 + $0x4] sm:$0xf] %vm1328, 0
          %vm1465 = vcmask 253952
          %1466 = vst.msk [vmem:[#allocation2 + $0x8] sm:$0x1] %vm1465, 0
          %s1467 = scalar_lea.vmem [#allocation2], 108
          %1468 = vst.msk [vmem:[%s1467] sm:$0xf] %vm1328, 0
          %1469 = vst.msk [vmem:[%s1467 + $0x4] sm:$0xf] %vm1328, 0
          %1470 = vst.msk [vmem:[%s1467 + $0x8] sm:$0x1] %vm1465, 0
        $region52: #{tpu_custom_call.1} parent=47 // pred_fallthru
          _
        %v1471 = vld [vmem:[#allocation2] sm:$0xf]
        %v1472 = vld [vmem:[#allocation2 + $0x4] sm:$0xf]
        %v1473 = vld [vmem:[#allocation2 + $0xc] sm:$0xf]
        %v1474 = vld [vmem:[#allocation2 + $0x10] sm:$0xf]
        %v1475 = vld [vmem:[#allocation2 + $0x18] sm:$0xf]
        %v1476 = vld [vmem:[#allocation2 + $0x1c] sm:$0xf]
        %v1477 = vld [vmem:[#allocation2 + $0x24] sm:$0xf]
        %v1478 = vld [vmem:[#allocation2 + $0x28] sm:$0xf]
        %v1479 = vld [vmem:[#allocation2 + $0x30] sm:$0xf]
        %v1480 = vld [vmem:[#allocation2 + $0x34] sm:$0xf]
        %v1481 = vld [vmem:[#allocation2 + $0x3c] sm:$0xf]
        %v1482 = vld [vmem:[#allocation2 + $0x40] sm:$0xf]
        %v1483 = vld [vmem:[#allocation2 + $0x48] sm:$0xf]
        %v1484 = vld [vmem:[#allocation2 + $0x4c] sm:$0xf]
        %v1485 = vld [vmem:[#allocation2 + $0x54] sm:$0xf]
        %v1486 = vld [vmem:[#allocation2 + $0x58] sm:$0xf]
        %v1487 = vld [vmem:[#allocation2 + $0x8] sm:$0x1]
        %v1488 = vld [vmem:[#allocation2 + $0x14] sm:$0x1]
        %v1489 = vld [vmem:[#allocation2 + $0x20] sm:$0x1]
        %v1490 = vld [vmem:[#allocation2 + $0x2c] sm:$0x1]
        %v1491 = vld [vmem:[#allocation2 + $0x38] sm:$0x1]
        %v1492 = vld [vmem:[#allocation2 + $0x44] sm:$0x1]
        %v1493 = vld [vmem:[#allocation2 + $0x50] sm:$0x1]
        %v1494 = vld [vmem:[#allocation2 + $0x5c] sm:$0x1]
        %v1495 = vld [vmem:[#allocation2] sm:$0xe]
        %v1496 = vld [vmem:[#allocation2 + $0xc] sm:$0xe]
        %v1497 = vld [vmem:[#allocation2 + $0x18] sm:$0xe]
        %v1498 = vld [vmem:[#allocation2 + $0x24] sm:$0xe]
        %v1499 = vld [vmem:[#allocation2 + $0x30] sm:$0xe]
        %v1500 = vld [vmem:[#allocation2 + $0x3c] sm:$0xe]
        %v1501 = vld [vmem:[#allocation2 + $0x48] sm:$0xe]
        %v1502 = vld [vmem:[#allocation2 + $0x54] sm:$0xe]
        %s1503 = scalar_lea.vmem [#allocation2], 12
        %v1504 = vld [vmem:[%s1503] sm:$0xf]
        %v1505 = vld [vmem:[%s1503 + $0x4] sm:$0xf]
        %v1506 = vld [vmem:[%s1503 + $0xc] sm:$0xf]
        %v1507 = vld [vmem:[%s1503 + $0x10] sm:$0xf]
        %v1508 = vld [vmem:[%s1503 + $0x18] sm:$0xf]
        %v1509 = vld [vmem:[%s1503 + $0x1c] sm:$0xf]
        %v1510 = vld [vmem:[%s1503 + $0x24] sm:$0xf]
        %v1511 = vld [vmem:[%s1503 + $0x28] sm:$0xf]
        %v1512 = vld [vmem:[%s1503 + $0x30] sm:$0xf]
        %v1513 = vld [vmem:[%s1503 + $0x34] sm:$0xf]
        %v1514 = vld [vmem:[%s1503 + $0x3c] sm:$0xf]
        %v1515 = vld [vmem:[%s1503 + $0x40] sm:$0xf]
        %v1516 = vld [vmem:[%s1503 + $0x48] sm:$0xf]
        %v1517 = vld [vmem:[%s1503 + $0x4c] sm:$0xf]
        %v1518 = vld [vmem:[%s1503 + $0x54] sm:$0xf]
        %v1519 = vld [vmem:[%s1503 + $0x58] sm:$0xf]
        %v1520 = vld [vmem:[%s1503 + $0x8] sm:$0x1]
        %v1521 = vld [vmem:[%s1503 + $0x14] sm:$0x1]
        %v1522 = vld [vmem:[%s1503 + $0x20] sm:$0x1]
        %v1523 = vld [vmem:[%s1503 + $0x2c] sm:$0x1]
        %v1524 = vld [vmem:[%s1503 + $0x38] sm:$0x1]
        %v1525 = vld [vmem:[%s1503 + $0x44] sm:$0x1]
        %v1526 = vld [vmem:[%s1503 + $0x50] sm:$0x1]
        %v1527 = vld [vmem:[%s1503 + $0x5c] sm:$0x1]
        %v1528 = vld [vmem:[%s1503] sm:$0xe]
        %v1529 = vld [vmem:[%s1503 + $0xc] sm:$0xe]
        %v1530 = vld [vmem:[%s1503 + $0x18] sm:$0xe]
        %v1531 = vld [vmem:[%s1503 + $0x24] sm:$0xe]
        %v1532 = vld [vmem:[%s1503 + $0x30] sm:$0xe]
        %v1533 = vld [vmem:[%s1503 + $0x3c] sm:$0xe]
        %v1534 = vld [vmem:[%s1503 + $0x48] sm:$0xe]
        %v1535 = vld [vmem:[%s1503 + $0x54] sm:$0xe]
        %s1536 = scalar_lea.vmem [#allocation2], 24
        %v1537 = vld [vmem:[%s1536] sm:$0xf]
        %v1538 = vld [vmem:[%s1536 + $0x4] sm:$0xf]
        %v1539 = vld [vmem:[%s1536 + $0xc] sm:$0xf]
        %v1540 = vld [vmem:[%s1536 + $0x10] sm:$0xf]
        %v1541 = vld [vmem:[%s1536 + $0x18] sm:$0xf]
        %v1542 = vld [vmem:[%s1536 + $0x1c] sm:$0xf]
        %v1543 = vld [vmem:[%s1536 + $0x24] sm:$0xf]
        %v1544 = vld [vmem:[%s1536 + $0x28] sm:$0xf]
        %v1545 = vld [vmem:[%s1536 + $0x30] sm:$0xf]
        %v1546 = vld [vmem:[%s1536 + $0x34] sm:$0xf]
        %v1547 = vld [vmem:[%s1536 + $0x3c] sm:$0xf]
        %v1548 = vld [vmem:[%s1536 + $0x40] sm:$0xf]
        %v1549 = vld [vmem:[%s1536 + $0x48] sm:$0xf]
        %v1550 = vld [vmem:[%s1536 + $0x4c] sm:$0xf]
        %v1551 = vld [vmem:[%s1536 + $0x54] sm:$0xf]
        %v1552 = vld [vmem:[%s1536 + $0x58] sm:$0xf]
        %v1553 = vld [vmem:[%s1536 + $0x8] sm:$0x1]
        %v1554 = vld [vmem:[%s1536 + $0x14] sm:$0x1]
        %v1555 = vld [vmem:[%s1536 + $0x20] sm:$0x1]
        %v1556 = vld [vmem:[%s1536 + $0x2c] sm:$0x1]
        %v1557 = vld [vmem:[%s1536 + $0x38] sm:$0x1]
        %v1558 = vld [vmem:[%s1536 + $0x44] sm:$0x1]
        %v1559 = vld [vmem:[%s1536 + $0x50] sm:$0x1]
        %v1560 = vld [vmem:[%s1536 + $0x5c] sm:$0x1]
        %v1561 = vld [vmem:[%s1536] sm:$0xe]
        %v1562 = vld [vmem:[%s1536 + $0xc] sm:$0xe]
        %v1563 = vld [vmem:[%s1536 + $0x18] sm:$0xe]
        %v1564 = vld [vmem:[%s1536 + $0x24] sm:$0xe]
        %v1565 = vld [vmem:[%s1536 + $0x30] sm:$0xe]
        %v1566 = vld [vmem:[%s1536 + $0x3c] sm:$0xe]
        %v1567 = vld [vmem:[%s1536 + $0x48] sm:$0xe]
        %v1568 = vld [vmem:[%s1536 + $0x54] sm:$0xe]
        %v1585 = vunpack.c.l.b16 %v1471
        %v1586 = vunpack.c.l.b16 %v1472
        %v1587 = vunpack.c.l.b16 %v1473
        %v1588 = vunpack.c.l.b16 %v1474
        %v1589 = vunpack.c.l.b16 %v1475
        %v1590 = vunpack.c.l.b16 %v1476
        %v1591 = vunpack.c.l.b16 %v1477
        %v1592 = vunpack.c.l.b16 %v1478
        %v1593 = vunpack.c.l.b16 %v1479
        %v1594 = vunpack.c.l.b16 %v1480
        %v1595 = vunpack.c.l.b16 %v1481
        %v1596 = vunpack.c.l.b16 %v1482
        %v1597 = vunpack.c.l.b16 %v1483
        %v1598 = vunpack.c.l.b16 %v1484
        %v1599 = vunpack.c.l.b16 %v1485
        %v1600 = vunpack.c.l.b16 %v1486
        %v1601 = vpack.c.b16 %v1586, %v1585
        %v1602 = vpack.c.b16 %v1588, %v1587
        %v1603 = vpack.c.b16 %v1590, %v1589
        %v1604 = vpack.c.b16 %v1592, %v1591
        %v1605 = vpack.c.b16 %v1594, %v1593
        %v1606 = vpack.c.b16 %v1596, %v1595
        %v1607 = vpack.c.b16 %v1598, %v1597
        %v1608 = vpack.c.b16 %v1600, %v1599
        %v1617 = vunpack.c.l.b16 %v1487
        %v1618 = vunpack.c.l.b16 %v1488
        %v1619 = vunpack.c.l.b16 %v1489
        %v1620 = vunpack.c.l.b16 %v1490
        %v1621 = vunpack.c.l.b16 %v1491
        %v1622 = vunpack.c.l.b16 %v1492
        %v1623 = vunpack.c.l.b16 %v1493
        %v1624 = vunpack.c.l.b16 %v1494
        %v1625 = vpack.c.b16 %v1617, %v1617
        %v1626 = vpack.c.b16 %v1618, %v1618
        %v1627 = vpack.c.b16 %v1619, %v1619
        %v1628 = vpack.c.b16 %v1620, %v1620
        %v1629 = vpack.c.b16 %v1621, %v1621
        %v1630 = vpack.c.b16 %v1622, %v1622
        %v1631 = vpack.c.b16 %v1623, %v1623
        %v1632 = vpack.c.b16 %v1624, %v1624
        %vm1633 = vsmask.f32 7424
        %v1635 = vshrl.u32 %v1601, 16
        %v1637 = vshll.u32 %v1601, 16
        %v1639 = vrot.slane %v1637, 1
        %v1640 = vor.u32 %v1635, %v1639
        %v1642 = vshll.u32 %v1625, 16
        %v1644 = vrot.slane %v1642, 1
        %v1645 = vsel %vm1633, %v1640, %v1644
        %v1647 = vshrl.u32 %v1602, 16
        %v1649 = vshll.u32 %v1602, 16
        %v1651 = vrot.slane %v1649, 1
        %v1652 = vor.u32 %v1647, %v1651
        %v1654 = vshll.u32 %v1626, 16
        %v1656 = vrot.slane %v1654, 1
        %v1657 = vsel %vm1633, %v1652, %v1656
        %v1659 = vshrl.u32 %v1603, 16
        %v1661 = vshll.u32 %v1603, 16
        %v1663 = vrot.slane %v1661, 1
        %v1664 = vor.u32 %v1659, %v1663
        %v1666 = vshll.u32 %v1627, 16
        %v1668 = vrot.slane %v1666, 1
        %v1669 = vsel %vm1633, %v1664, %v1668
        %v1671 = vshrl.u32 %v1604, 16
        %v1673 = vshll.u32 %v1604, 16
        %v1675 = vrot.slane %v1673, 1
        %v1676 = vor.u32 %v1671, %v1675
        %v1678 = vshll.u32 %v1628, 16
        %v1680 = vrot.slane %v1678, 1
        %v1681 = vsel %vm1633, %v1676, %v1680
        %v1683 = vshrl.u32 %v1605, 16
        %v1685 = vshll.u32 %v1605, 16
        %v1687 = vrot.slane %v1685, 1
        %v1688 = vor.u32 %v1683, %v1687
        %v1690 = vshll.u32 %v1629, 16
        %v1692 = vrot.slane %v1690, 1
        %v1693 = vsel %vm1633, %v1688, %v1692
        %v1695 = vshrl.u32 %v1606, 16
        %v1697 = vshll.u32 %v1606, 16
        %v1699 = vrot.slane %v1697, 1
        %v1700 = vor.u32 %v1695, %v1699
        %v1702 = vshll.u32 %v1630, 16
        %v1704 = vrot.slane %v1702, 1
        %v1705 = vsel %vm1633, %v1700, %v1704
        %v1707 = vshrl.u32 %v1607, 16
        %v1709 = vshll.u32 %v1607, 16
        %v1711 = vrot.slane %v1709, 1
        %v1712 = vor.u32 %v1707, %v1711
        %v1714 = vshll.u32 %v1631, 16
        %v1716 = vrot.slane %v1714, 1
        %v1717 = vsel %vm1633, %v1712, %v1716
        %v1719 = vshrl.u32 %v1608, 16
        %v1721 = vshll.u32 %v1608, 16
        %v1723 = vrot.slane %v1721, 1
        %v1724 = vor.u32 %v1719, %v1723
        %v1726 = vshll.u32 %v1632, 16
        %v1728 = vrot.slane %v1726, 1
        %v1729 = vsel %vm1633, %v1724, %v1728
        %1730 = vrot.lane.b32.xlu0 %v1645, 32
        %v1731 = vpop.permute.xlu0 %1730
        %1732 = vrot.lane.b32.xlu0 %v1657, 32
        %v1733 = vpop.permute.xlu0 %1732
        %1734 = vrot.lane.b32.xlu0 %v1669, 32
        %v1735 = vpop.permute.xlu0 %1734
        %1736 = vrot.lane.b32.xlu0 %v1681, 32
        %v1737 = vpop.permute.xlu0 %1736
        %1738 = vrot.lane.b32.xlu0 %v1693, 32
        %v1739 = vpop.permute.xlu0 %1738
        %1740 = vrot.lane.b32.xlu0 %v1705, 32
        %v1741 = vpop.permute.xlu0 %1740
        %1742 = vrot.lane.b32.xlu0 %v1717, 32
        %v1743 = vpop.permute.xlu0 %1742
        %1744 = vrot.lane.b32.xlu0 %v1729, 32
        %v1745 = vpop.permute.xlu0 %1744
        %v1754 = vunpack.c.l.b16 %v1495
        %v1755 = vunpack.c.l.b16 %v1496
        %v1756 = vunpack.c.l.b16 %v1497
        %v1757 = vunpack.c.l.b16 %v1498
        %v1758 = vunpack.c.l.b16 %v1499
        %v1759 = vunpack.c.l.b16 %v1500
        %v1760 = vunpack.c.l.b16 %v1501
        %v1761 = vunpack.c.l.b16 %v1502
        %v1762 = vpack.c.b16 %v1586, %v1754
        %v1763 = vpack.c.b16 %v1588, %v1755
        %v1764 = vpack.c.b16 %v1590, %v1756
        %v1765 = vpack.c.b16 %v1592, %v1757
        %v1766 = vpack.c.b16 %v1594, %v1758
        %v1767 = vpack.c.b16 %v1596, %v1759
        %v1768 = vpack.c.b16 %v1598, %v1760
        %v1769 = vpack.c.b16 %v1600, %v1761
        %vm1770 = vcmask 1046528
        %v1771 = vrot.slane %v1762, 1
        %v1772 = vrot.slane %v1625, 1
        %v1773 = vsel %vm1770, %v1771, %v1772
        %v1774 = vrot.slane %v1763, 1
        %v1775 = vrot.slane %v1626, 1
        %v1776 = vsel %vm1770, %v1774, %v1775
        %v1777 = vrot.slane %v1764, 1
        %v1778 = vrot.slane %v1627, 1
        %v1779 = vsel %vm1770, %v1777, %v1778
        %v1780 = vrot.slane %v1765, 1
        %v1781 = vrot.slane %v1628, 1
        %v1782 = vsel %vm1770, %v1780, %v1781
        %v1783 = vrot.slane %v1766, 1
        %v1784 = vrot.slane %v1629, 1
        %v1785 = vsel %vm1770, %v1783, %v1784
        %v1786 = vrot.slane %v1767, 1
        %v1787 = vrot.slane %v1630, 1
        %v1788 = vsel %vm1770, %v1786, %v1787
        %v1789 = vrot.slane %v1768, 1
        %v1790 = vrot.slane %v1631, 1
        %v1791 = vsel %vm1770, %v1789, %v1790
        %v1792 = vrot.slane %v1769, 1
        %v1793 = vrot.slane %v1632, 1
        %v1794 = vsel %vm1770, %v1792, %v1793
        %1795 = vrot.lane.b32.xlu0 %v1773, 64
        %v1796 = vpop.permute.xlu0 %1795
        %1797 = vrot.lane.b32.xlu0 %v1776, 64
        %v1798 = vpop.permute.xlu0 %1797
        %1799 = vrot.lane.b32.xlu0 %v1779, 64
        %v1800 = vpop.permute.xlu0 %1799
        %1801 = vrot.lane.b32.xlu0 %v1782, 64
        %v1802 = vpop.permute.xlu0 %1801
        %1803 = vrot.lane.b32.xlu0 %v1785, 64
        %v1804 = vpop.permute.xlu0 %1803
        %1805 = vrot.lane.b32.xlu0 %v1788, 64
        %v1806 = vpop.permute.xlu0 %1805
        %1807 = vrot.lane.b32.xlu0 %v1791, 64
        %v1808 = vpop.permute.xlu0 %1807
        %1809 = vrot.lane.b32.xlu0 %v1794, 64
        %v1810 = vpop.permute.xlu0 %1809
        %v1827 = vunpack.c.l.b16 %v1504
        %v1828 = vunpack.c.l.b16 %v1505
        %v1829 = vunpack.c.l.b16 %v1506
        %v1830 = vunpack.c.l.b16 %v1507
        %v1831 = vunpack.c.l.b16 %v1508
        %v1832 = vunpack.c.l.b16 %v1509
        %v1833 = vunpack.c.l.b16 %v1510
        %v1834 = vunpack.c.l.b16 %v1511
        %v1835 = vunpack.c.l.b16 %v1512
        %v1836 = vunpack.c.l.b16 %v1513
        %v1837 = vunpack.c.l.b16 %v1514
        %v1838 = vunpack.c.l.b16 %v1515
        %v1839 = vunpack.c.l.b16 %v1516
        %v1840 = vunpack.c.l.b16 %v1517
        %v1841 = vunpack.c.l.b16 %v1518
        %v1842 = vunpack.c.l.b16 %v1519
        %v1843 = vpack.c.b16 %v1828, %v1827
        %v1844 = vpack.c.b16 %v1830, %v1829
        %v1845 = vpack.c.b16 %v1832, %v1831
        %v1846 = vpack.c.b16 %v1834, %v1833
        %v1847 = vpack.c.b16 %v1836, %v1835
        %v1848 = vpack.c.b16 %v1838, %v1837
        %v1849 = vpack.c.b16 %v1840, %v1839
        %v1850 = vpack.c.b16 %v1842, %v1841
        %1851 = vrot.lane.b32.xlu0 %v1843, 96
        %v1852 = vpop.permute.xlu0 %1851
        %1853 = vrot.lane.b32.xlu0 %v1844, 96
        %v1854 = vpop.permute.xlu0 %1853
        %1855 = vrot.lane.b32.xlu0 %v1845, 96
        %v1856 = vpop.permute.xlu0 %1855
        %1857 = vrot.lane.b32.xlu0 %v1846, 96
        %v1858 = vpop.permute.xlu0 %1857
        %1859 = vrot.lane.b32.xlu0 %v1847, 96
        %v1860 = vpop.permute.xlu0 %1859
        %1861 = vrot.lane.b32.xlu0 %v1848, 96
        %v1862 = vpop.permute.xlu0 %1861
        %1863 = vrot.lane.b32.xlu0 %v1849, 96
        %v1864 = vpop.permute.xlu0 %1863
        %1865 = vrot.lane.b32.xlu0 %v1850, 96
        %v1866 = vpop.permute.xlu0 %1865
        %v1875 = vunpack.c.l.b16 %v1520
        %v1876 = vunpack.c.l.b16 %v1521
        %v1877 = vunpack.c.l.b16 %v1522
        %v1878 = vunpack.c.l.b16 %v1523
        %v1879 = vunpack.c.l.b16 %v1524
        %v1880 = vunpack.c.l.b16 %v1525
        %v1881 = vunpack.c.l.b16 %v1526
        %v1882 = vunpack.c.l.b16 %v1527
        %v1883 = vpack.c.b16 %v1875, %v1875
        %v1884 = vpack.c.b16 %v1876, %v1876
        %v1885 = vpack.c.b16 %v1877, %v1877
        %v1886 = vpack.c.b16 %v1878, %v1878
        %v1887 = vpack.c.b16 %v1879, %v1879
        %v1888 = vpack.c.b16 %v1880, %v1880
        %v1889 = vpack.c.b16 %v1881, %v1881
        %v1890 = vpack.c.b16 %v1882, %v1882
        %v1892 = vshrl.u32 %v1843, 16
        %v1894 = vshll.u32 %v1843, 16
        %v1896 = vrot.slane %v1894, 1
        %v1897 = vor.u32 %v1892, %v1896
        %v1899 = vshll.u32 %v1883, 16
        %v1901 = vrot.slane %v1899, 1
        %v1902 = vsel %vm1633, %v1897, %v1901
        %v1904 = vshrl.u32 %v1844, 16
        %v1906 = vshll.u32 %v1844, 16
        %v1908 = vrot.slane %v1906, 1
        %v1909 = vor.u32 %v1904, %v1908
        %v1911 = vshll.u32 %v1884, 16
        %v1913 = vrot.slane %v1911, 1
        %v1914 = vsel %vm1633, %v1909, %v1913
        %v1916 = vshrl.u32 %v1845, 16
        %v1918 = vshll.u32 %v1845, 16
        %v1920 = vrot.slane %v1918, 1
        %v1921 = vor.u32 %v1916, %v1920
        %v1923 = vshll.u32 %v1885, 16
        %v1925 = vrot.slane %v1923, 1
        %v1926 = vsel %vm1633, %v1921, %v1925
        %v1928 = vshrl.u32 %v1846, 16
        %v1930 = vshll.u32 %v1846, 16
        %v1932 = vrot.slane %v1930, 1
        %v1933 = vor.u32 %v1928, %v1932
        %v1935 = vshll.u32 %v1886, 16
        %v1937 = vrot.slane %v1935, 1
        %v1938 = vsel %vm1633, %v1933, %v1937
        %v1940 = vshrl.u32 %v1847, 16
        %v1942 = vshll.u32 %v1847, 16
        %v1944 = vrot.slane %v1942, 1
        %v1945 = vor.u32 %v1940, %v1944
        %v1947 = vshll.u32 %v1887, 16
        %v1949 = vrot.slane %v1947, 1
        %v1950 = vsel %vm1633, %v1945, %v1949
        %v1952 = vshrl.u32 %v1848, 16
        %v1954 = vshll.u32 %v1848, 16
        %v1956 = vrot.slane %v1954, 1
        %v1957 = vor.u32 %v1952, %v1956
        %v1959 = vshll.u32 %v1888, 16
        %v1961 = vrot.slane %v1959, 1
        %v1962 = vsel %vm1633, %v1957, %v1961
        %v1964 = vshrl.u32 %v1849, 16
        %v1966 = vshll.u32 %v1849, 16
        %v1968 = vrot.slane %v1966, 1
        %v1969 = vor.u32 %v1964, %v1968
        %v1971 = vshll.u32 %v1889, 16
        %v1973 = vrot.slane %v1971, 1
        %v1974 = vsel %vm1633, %v1969, %v1973
        %v1976 = vshrl.u32 %v1850, 16
        %v1978 = vshll.u32 %v1850, 16
        %v1980 = vrot.slane %v1978, 1
        %v1981 = vor.u32 %v1976, %v1980
        %v1983 = vshll.u32 %v1890, 16
        %v1985 = vrot.slane %v1983, 1
        %v1986 = vsel %vm1633, %v1981, %v1985
        %v1995 = vunpack.c.l.b16 %v1528
        %v1996 = vunpack.c.l.b16 %v1529
        %v1997 = vunpack.c.l.b16 %v1530
        %v1998 = vunpack.c.l.b16 %v1531
        %v1999 = vunpack.c.l.b16 %v1532
        %v2000 = vunpack.c.l.b16 %v1533
        %v2001 = vunpack.c.l.b16 %v1534
        %v2002 = vunpack.c.l.b16 %v1535
        %v2003 = vpack.c.b16 %v1828, %v1995
        %v2004 = vpack.c.b16 %v1830, %v1996
        %v2005 = vpack.c.b16 %v1832, %v1997
        %v2006 = vpack.c.b16 %v1834, %v1998
        %v2007 = vpack.c.b16 %v1836, %v1999
        %v2008 = vpack.c.b16 %v1838, %v2000
        %v2009 = vpack.c.b16 %v1840, %v2001
        %v2010 = vpack.c.b16 %v1842, %v2002
        %v2011 = vrot.slane %v2003, 1
        %v2012 = vrot.slane %v1883, 1
        %v2013 = vsel %vm1770, %v2011, %v2012
        %v2014 = vrot.slane %v2004, 1
        %v2015 = vrot.slane %v1884, 1
        %v2016 = vsel %vm1770, %v2014, %v2015
        %v2017 = vrot.slane %v2005, 1
        %v2018 = vrot.slane %v1885, 1
        %v2019 = vsel %vm1770, %v2017, %v2018
        %v2020 = vrot.slane %v2006, 1
        %v2021 = vrot.slane %v1886, 1
        %v2022 = vsel %vm1770, %v2020, %v2021
        %v2023 = vrot.slane %v2007, 1
        %v2024 = vrot.slane %v1887, 1
        %v2025 = vsel %vm1770, %v2023, %v2024
        %v2026 = vrot.slane %v2008, 1
        %v2027 = vrot.slane %v1888, 1
        %v2028 = vsel %vm1770, %v2026, %v2027
        %v2029 = vrot.slane %v2009, 1
        %v2030 = vrot.slane %v1889, 1
        %v2031 = vsel %vm1770, %v2029, %v2030
        %v2032 = vrot.slane %v2010, 1
        %v2033 = vrot.slane %v1890, 1
        %v2034 = vsel %vm1770, %v2032, %v2033
        %2035 = vrot.lane.b32.xlu0 %v2013, 32
        %v2036 = vpop.permute.xlu0 %2035
        %2037 = vrot.lane.b32.xlu0 %v2016, 32
        %v2038 = vpop.permute.xlu0 %2037
        %2039 = vrot.lane.b32.xlu0 %v2019, 32
        %v2040 = vpop.permute.xlu0 %2039
        %2041 = vrot.lane.b32.xlu0 %v2022, 32
        %v2042 = vpop.permute.xlu0 %2041
        %2043 = vrot.lane.b32.xlu0 %v2025, 32
        %v2044 = vpop.permute.xlu0 %2043
        %2045 = vrot.lane.b32.xlu0 %v2028, 32
        %v2046 = vpop.permute.xlu0 %2045
        %2047 = vrot.lane.b32.xlu0 %v2031, 32
        %v2048 = vpop.permute.xlu0 %2047
        %2049 = vrot.lane.b32.xlu0 %v2034, 32
        %v2050 = vpop.permute.xlu0 %2049
        %v2067 = vunpack.c.l.b16 %v1537
        %v2068 = vunpack.c.l.b16 %v1538
        %v2069 = vunpack.c.l.b16 %v1539
        %v2070 = vunpack.c.l.b16 %v1540
        %v2071 = vunpack.c.l.b16 %v1541
        %v2072 = vunpack.c.l.b16 %v1542
        %v2073 = vunpack.c.l.b16 %v1543
        %v2074 = vunpack.c.l.b16 %v1544
        %v2075 = vunpack.c.l.b16 %v1545
        %v2076 = vunpack.c.l.b16 %v1546
        %v2077 = vunpack.c.l.b16 %v1547
        %v2078 = vunpack.c.l.b16 %v1548
        %v2079 = vunpack.c.l.b16 %v1549
        %v2080 = vunpack.c.l.b16 %v1550
        %v2081 = vunpack.c.l.b16 %v1551
        %v2082 = vunpack.c.l.b16 %v1552
        %v2083 = vpack.c.b16 %v2068, %v2067
        %v2084 = vpack.c.b16 %v2070, %v2069
        %v2085 = vpack.c.b16 %v2072, %v2071
        %v2086 = vpack.c.b16 %v2074, %v2073
        %v2087 = vpack.c.b16 %v2076, %v2075
        %v2088 = vpack.c.b16 %v2078, %v2077
        %v2089 = vpack.c.b16 %v2080, %v2079
        %v2090 = vpack.c.b16 %v2082, %v2081
        %2091 = vrot.lane.b32.xlu0 %v2083, 64
        %v2092 = vpop.permute.xlu0 %2091
        %2093 = vrot.lane.b32.xlu0 %v2084, 64
        %v2094 = vpop.permute.xlu0 %2093
        %2095 = vrot.lane.b32.xlu0 %v2085, 64
        %v2096 = vpop.permute.xlu0 %2095
        %2097 = vrot.lane.b32.xlu0 %v2086, 64
        %v2098 = vpop.permute.xlu0 %2097
        %2099 = vrot.lane.b32.xlu0 %v2087, 64
        %v2100 = vpop.permute.xlu0 %2099
        %2101 = vrot.lane.b32.xlu0 %v2088, 64
        %v2102 = vpop.permute.xlu0 %2101
        %2103 = vrot.lane.b32.xlu0 %v2089, 64
        %v2104 = vpop.permute.xlu0 %2103
        %2105 = vrot.lane.b32.xlu0 %v2090, 64
        %v2106 = vpop.permute.xlu0 %2105
        %v2115 = vunpack.c.l.b16 %v1553
        %v2116 = vunpack.c.l.b16 %v1554
        %v2117 = vunpack.c.l.b16 %v1555
        %v2118 = vunpack.c.l.b16 %v1556
        %v2119 = vunpack.c.l.b16 %v1557
        %v2120 = vunpack.c.l.b16 %v1558
        %v2121 = vunpack.c.l.b16 %v1559
        %v2122 = vunpack.c.l.b16 %v1560
        %v2123 = vpack.c.b16 %v2115, %v2115
        %v2124 = vpack.c.b16 %v2116, %v2116
        %v2125 = vpack.c.b16 %v2117, %v2117
        %v2126 = vpack.c.b16 %v2118, %v2118
        %v2127 = vpack.c.b16 %v2119, %v2119
        %v2128 = vpack.c.b16 %v2120, %v2120
        %v2129 = vpack.c.b16 %v2121, %v2121
        %v2130 = vpack.c.b16 %v2122, %v2122
        %v2132 = vshrl.u32 %v2083, 16
        %v2134 = vshll.u32 %v2083, 16
        %v2136 = vrot.slane %v2134, 1
        %v2137 = vor.u32 %v2132, %v2136
        %v2139 = vshll.u32 %v2123, 16
        %v2141 = vrot.slane %v2139, 1
        %v2142 = vsel %vm1633, %v2137, %v2141
        %v2144 = vshrl.u32 %v2084, 16
        %v2146 = vshll.u32 %v2084, 16
        %v2148 = vrot.slane %v2146, 1
        %v2149 = vor.u32 %v2144, %v2148
        %v2151 = vshll.u32 %v2124, 16
        %v2153 = vrot.slane %v2151, 1
        %v2154 = vsel %vm1633, %v2149, %v2153
        %v2156 = vshrl.u32 %v2085, 16
        %v2158 = vshll.u32 %v2085, 16
        %v2160 = vrot.slane %v2158, 1
        %v2161 = vor.u32 %v2156, %v2160
        %v2163 = vshll.u32 %v2125, 16
        %v2165 = vrot.slane %v2163, 1
        %v2166 = vsel %vm1633, %v2161, %v2165
        %v2168 = vshrl.u32 %v2086, 16
        %v2170 = vshll.u32 %v2086, 16
        %v2172 = vrot.slane %v2170, 1
        %v2173 = vor.u32 %v2168, %v2172
        %v2175 = vshll.u32 %v2126, 16
        %v2177 = vrot.slane %v2175, 1
        %v2178 = vsel %vm1633, %v2173, %v2177
        %v2180 = vshrl.u32 %v2087, 16
        %v2182 = vshll.u32 %v2087, 16
        %v2184 = vrot.slane %v2182, 1
        %v2185 = vor.u32 %v2180, %v2184
        %v2187 = vshll.u32 %v2127, 16
        %v2189 = vrot.slane %v2187, 1
        %v2190 = vsel %vm1633, %v2185, %v2189
        %v2192 = vshrl.u32 %v2088, 16
        %v2194 = vshll.u32 %v2088, 16
        %v2196 = vrot.slane %v2194, 1
        %v2197 = vor.u32 %v2192, %v2196
        %v2199 = vshll.u32 %v2128, 16
        %v2201 = vrot.slane %v2199, 1
        %v2202 = vsel %vm1633, %v2197, %v2201
        %v2204 = vshrl.u32 %v2089, 16
        %v2206 = vshll.u32 %v2089, 16
        %v2208 = vrot.slane %v2206, 1
        %v2209 = vor.u32 %v2204, %v2208
        %v2211 = vshll.u32 %v2129, 16
        %v2213 = vrot.slane %v2211, 1
        %v2214 = vsel %vm1633, %v2209, %v2213
        %v2216 = vshrl.u32 %v2090, 16
        %v2218 = vshll.u32 %v2090, 16
        %v2220 = vrot.slane %v2218, 1
        %v2221 = vor.u32 %v2216, %v2220
        %v2223 = vshll.u32 %v2130, 16
        %v2225 = vrot.slane %v2223, 1
        %v2226 = vsel %vm1633, %v2221, %v2225
        %2227 = vrot.lane.b32.xlu0 %v2142, 96
        %v2228 = vpop.permute.xlu0 %2227
        %2229 = vrot.lane.b32.xlu0 %v2154, 96
        %v2230 = vpop.permute.xlu0 %2229
        %2231 = vrot.lane.b32.xlu0 %v2166, 96
        %v2232 = vpop.permute.xlu0 %2231
        %2233 = vrot.lane.b32.xlu0 %v2178, 96
        %v2234 = vpop.permute.xlu0 %2233
        %2235 = vrot.lane.b32.xlu0 %v2190, 96
        %v2236 = vpop.permute.xlu0 %2235
        %2237 = vrot.lane.b32.xlu0 %v2202, 96
        %v2238 = vpop.permute.xlu0 %2237
        %2239 = vrot.lane.b32.xlu0 %v2214, 96
        %v2240 = vpop.permute.xlu0 %2239
        %2241 = vrot.lane.b32.xlu0 %v2226, 96
        %v2242 = vpop.permute.xlu0 %2241
        %v2251 = vunpack.c.l.b16 %v1561
        %v2252 = vunpack.c.l.b16 %v1562
        %v2253 = vunpack.c.l.b16 %v1563
        %v2254 = vunpack.c.l.b16 %v1564
        %v2255 = vunpack.c.l.b16 %v1565
        %v2256 = vunpack.c.l.b16 %v1566
        %v2257 = vunpack.c.l.b16 %v1567
        %v2258 = vunpack.c.l.b16 %v1568
        %v2259 = vpack.c.b16 %v2068, %v2251
        %v2260 = vpack.c.b16 %v2070, %v2252
        %v2261 = vpack.c.b16 %v2072, %v2253
        %v2262 = vpack.c.b16 %v2074, %v2254
        %v2263 = vpack.c.b16 %v2076, %v2255
        %v2264 = vpack.c.b16 %v2078, %v2256
        %v2265 = vpack.c.b16 %v2080, %v2257
        %v2266 = vpack.c.b16 %v2082, %v2258
        %v2267 = vrot.slane %v2259, 1
        %v2268 = vrot.slane %v2123, 1
        %v2269 = vsel %vm1770, %v2267, %v2268
        %v2270 = vrot.slane %v2260, 1
        %v2271 = vrot.slane %v2124, 1
        %v2272 = vsel %vm1770, %v2270, %v2271
        %v2273 = vrot.slane %v2261, 1
        %v2274 = vrot.slane %v2125, 1
        %v2275 = vsel %vm1770, %v2273, %v2274
        %v2276 = vrot.slane %v2262, 1
        %v2277 = vrot.slane %v2126, 1
        %v2278 = vsel %vm1770, %v2276, %v2277
        %v2279 = vrot.slane %v2263, 1
        %v2280 = vrot.slane %v2127, 1
        %v2281 = vsel %vm1770, %v2279, %v2280
        %v2282 = vrot.slane %v2264, 1
        %v2283 = vrot.slane %v2128, 1
        %v2284 = vsel %vm1770, %v2282, %v2283
        %v2285 = vrot.slane %v2265, 1
        %v2286 = vrot.slane %v2129, 1
        %v2287 = vsel %vm1770, %v2285, %v2286
        %v2288 = vrot.slane %v2266, 1
        %v2289 = vrot.slane %v2130, 1
        %v2290 = vsel %vm1770, %v2288, %v2289
        %vm2291 = vcmask 261120
        %v2293 = vsel %vm2291, %v1601, %v1731
        %v2295 = vsel %vm2291, %v1602, %v1733
        %v2297 = vsel %vm2291, %v1603, %v1735
        %v2299 = vsel %vm2291, %v1604, %v1737
        %v2301 = vsel %vm2291, %v1605, %v1739
        %v2303 = vsel %vm2291, %v1606, %v1741
        %v2305 = vsel %vm2291, %v1607, %v1743
        %v2307 = vsel %vm2291, %v1608, %v1745
        %vm2308 = vcmask 523264
        %v2310 = vsel %vm2308, %v2293, %v1796
        %v2312 = vsel %vm2308, %v2295, %v1798
        %v2314 = vsel %vm2308, %v2297, %v1800
        %v2316 = vsel %vm2308, %v2299, %v1802
        %v2318 = vsel %vm2308, %v2301, %v1804
        %v2320 = vsel %vm2308, %v2303, %v1806
        %v2322 = vsel %vm2308, %v2305, %v1808
        %v2324 = vsel %vm2308, %v2307, %v1810
        %vm2325 = vcmask 785408
        %v2327 = vsel %vm2325, %v2310, %v1852
        %v2330 = vsel %vm2325, %v2312, %v1854
        %v2333 = vsel %vm2325, %v2314, %v1856
        %v2336 = vsel %vm2325, %v2316, %v1858
        %v2339 = vsel %vm2325, %v2318, %v1860
        %v2342 = vsel %vm2325, %v2320, %v1862
        %v2345 = vsel %vm2325, %v2322, %v1864
        %v2348 = vsel %vm2325, %v2324, %v1866
        %v2352 = vsel %vm2291, %v1902, %v2036
        %v2355 = vsel %vm2291, %v1914, %v2038
        %v2358 = vsel %vm2291, %v1926, %v2040
        %v2361 = vsel %vm2291, %v1938, %v2042
        %v2364 = vsel %vm2291, %v1950, %v2044
        %v2367 = vsel %vm2291, %v1962, %v2046
        %v2370 = vsel %vm2291, %v1974, %v2048
        %v2373 = vsel %vm2291, %v1986, %v2050
        %v2375 = vsel %vm2308, %v2352, %v2092
        %v2377 = vsel %vm2308, %v2355, %v2094
        %v2379 = vsel %vm2308, %v2358, %v2096
        %v2381 = vsel %vm2308, %v2361, %v2098
        %v2383 = vsel %vm2308, %v2364, %v2100
        %v2385 = vsel %vm2308, %v2367, %v2102
        %v2387 = vsel %vm2308, %v2370, %v2104
        %v2389 = vsel %vm2308, %v2373, %v2106
        %v2391 = vsel %vm2325, %v2375, %v2228
        %v2394 = vsel %vm2325, %v2377, %v2230
        %v2397 = vsel %vm2325, %v2379, %v2232
        %v2400 = vsel %vm2325, %v2381, %v2234
        %v2403 = vsel %vm2325, %v2383, %v2236
        %v2406 = vsel %vm2325, %v2385, %v2238
        %v2409 = vsel %vm2325, %v2387, %v2240
        %v2412 = vsel %vm2325, %v2389, %v2242
        %v2414 = vld [vmem:[%s3] sm:$0xf]
        %v2415 = vld [vmem:[%s3 + $0x4] sm:$0xf]
        %v2416 = vld [vmem:[%s3 + $0x8] sm:$0xf]
        %v2417 = vld [vmem:[%s3 + $0xc] sm:$0xf]
        %v2418 = vld [vmem:[%s3 + $0x10] sm:$0xf]
        %v2419 = vld [vmem:[%s3 + $0x14] sm:$0xf]
        %v2420 = vld [vmem:[%s3 + $0x18] sm:$0xf]
        %v2421 = vld [vmem:[%s3 + $0x1c] sm:$0xf]
        %v2422 = vld [vmem:[%s3 + $0x20] sm:$0xf]
        %v2423 = vld [vmem:[%s3 + $0x24] sm:$0xf]
        %v2424 = vld [vmem:[%s3 + $0x28] sm:$0xf]
        %v2425 = vld [vmem:[%s3 + $0x2c] sm:$0xf]
        %v2426 = vld [vmem:[%s3 + $0x30] sm:$0xf]
        %v2427 = vld [vmem:[%s3 + $0x34] sm:$0xf]
        %v2428 = vld [vmem:[%s3 + $0x38] sm:$0xf]
        %v2429 = vld [vmem:[%s3 + $0x3c] sm:$0xf]
        %v2430 = vld [vmem:[%s3 + $0x40] sm:$0xf]
        %v2431 = vld [vmem:[%s3 + $0x44] sm:$0xf]
        %v2432 = vld [vmem:[%s3 + $0x48] sm:$0xf]
        %v2433 = vld [vmem:[%s3 + $0x4c] sm:$0xf]
        %v2434 = vld [vmem:[%s3 + $0x50] sm:$0xf]
        %v2435 = vld [vmem:[%s3 + $0x54] sm:$0xf]
        %v2436 = vld [vmem:[%s3 + $0x58] sm:$0xf]
        %v2437 = vld [vmem:[%s3 + $0x5c] sm:$0xf]
        %v2438 = vld [vmem:[%s3 + $0x60] sm:$0xf]
        %v2439 = vld [vmem:[%s3 + $0x64] sm:$0xf]
        %v2440 = vld [vmem:[%s3 + $0x68] sm:$0xf]
        %v2441 = vld [vmem:[%s3 + $0x6c] sm:$0xf]
        %v2442 = vld [vmem:[%s3 + $0x70] sm:$0xf]
        %v2443 = vld [vmem:[%s3 + $0x74] sm:$0xf]
        %v2444 = vld [vmem:[%s3 + $0x78] sm:$0xf]
        %v2445 = vld [vmem:[%s3 + $0x7c] sm:$0xf]
        %v2446 = vld [vmem:[%s3 + $0x80] sm:$0xf]
        %v2447 = vld [vmem:[%s3 + $0x84] sm:$0xf]
        %v2448 = vld [vmem:[%s3 + $0x88] sm:$0xf]
        %v2449 = vld [vmem:[%s3 + $0x8c] sm:$0xf]
        %v2450 = vld [vmem:[%s4] sm:$0x1]
        %v2452 = vlaneseq
        %v2453 = vshrl.u32 %v2452, 7
        %v2454 = vsub.s32 0, %v2453
        %v2455 = vrot.slane %v2450, %v2454
        %v2493 = vunpack.c.l.b16 %v2414
        %v2494 = vunpack.c.l.b16 %v2415
        %v2495 = vunpack.c.l.b16 %v2416
        %v2496 = vunpack.c.l.b16 %v2417
        %v2497 = vunpack.c.l.b16 %v2418
        %v2498 = vunpack.c.l.b16 %v2419
        %v2499 = vunpack.c.l.b16 %v2420
        %v2500 = vunpack.c.l.b16 %v2421
        %v2501 = vunpack.c.l.b16 %v2422
        %v2502 = vunpack.c.l.b16 %v2423
        %v2503 = vunpack.c.l.b16 %v2424
        %v2504 = vunpack.c.l.b16 %v2425
        %v2505 = vunpack.c.l.b16 %v2426
        %v2506 = vunpack.c.l.b16 %v2427
        %v2507 = vunpack.c.l.b16 %v2428
        %v2508 = vunpack.c.l.b16 %v2429
        %v2509 = vunpack.c.l.b16 %v2430
        %v2510 = vunpack.c.l.b16 %v2431
        %v2511 = vunpack.c.l.b16 %v2432
        %v2512 = vunpack.c.l.b16 %v2433
        %v2513 = vunpack.c.l.b16 %v2434
        %v2514 = vunpack.c.l.b16 %v2435
        %v2515 = vunpack.c.l.b16 %v2436
        %v2516 = vunpack.c.l.b16 %v2437
        %v2517 = vunpack.c.l.b16 %v2438
        %v2518 = vunpack.c.l.b16 %v2439
        %v2519 = vunpack.c.l.b16 %v2440
        %v2520 = vunpack.c.l.b16 %v2441
        %v2521 = vunpack.c.l.b16 %v2442
        %v2522 = vunpack.c.l.b16 %v2443
        %v2523 = vunpack.c.l.b16 %v2444
        %v2524 = vunpack.c.l.b16 %v2445
        %v2525 = vunpack.c.l.b16 %v2446
        %v2526 = vunpack.c.l.b16 %v2447
        %v2527 = vunpack.c.l.b16 %v2448
        %v2528 = vunpack.c.l.b16 %v2449
        %v2529 = vpack.c.b16 %v2494, %v2493
        %v2530 = vpack.c.b16 %v2496, %v2495
        %v2531 = vpack.c.b16 %v2498, %v2497
        %v2532 = vpack.c.b16 %v2500, %v2499
        %v2533 = vpack.c.b16 %v2502, %v2501
        %v2534 = vpack.c.b16 %v2504, %v2503
        %v2535 = vpack.c.b16 %v2506, %v2505
        %v2536 = vpack.c.b16 %v2508, %v2507
        %v2537 = vpack.c.b16 %v2510, %v2509
        %v2538 = vpack.c.b16 %v2512, %v2511
        %v2539 = vpack.c.b16 %v2514, %v2513
        %v2540 = vpack.c.b16 %v2516, %v2515
        %v2541 = vpack.c.b16 %v2518, %v2517
        %v2542 = vpack.c.b16 %v2520, %v2519
        %v2543 = vpack.c.b16 %v2522, %v2521
        %v2544 = vpack.c.b16 %v2524, %v2523
        %v2545 = vpack.c.b16 %v2526, %v2525
        %v2546 = vpack.c.b16 %v2528, %v2527
        %v2566 = vsel %vm2291, %v2269, 0
        %v2569 = vsel %vm2291, %v2272, 0
        %v2572 = vsel %vm2291, %v2275, 0
        %v2575 = vsel %vm2291, %v2278, 0
        %v2578 = vsel %vm2291, %v2281, 0
        %v2581 = vsel %vm2291, %v2284, 0
        %v2584 = vsel %vm2291, %v2287, 0
        %v2587 = vsel %vm2291, %v2290, 0
        %2589 = vmatprep.subr.bf16.mxu0 0
        %2590 = vmatpush1.bf16.msra.mxu0 %v2529
        %2591 = vmatprep.subr.bf16.mxu0 0
        %2592 = vmatpush1.bf16.msra.mxu0 %v2530
        %2593 = vmatprep.subr.bf16.mxu0 0
        %2594 = vmatpush1.bf16.msra.mxu0 %v2531
        %2595 = vmatprep.subr.bf16.mxu0 0
        %2596 = vmatpush1.bf16.msra.mxu0 %v2532
        %2597 = vmatprep.subr.bf16.mxu0 0
        %2598 = vmatpush1.bf16.msra.mxu0 %v2533
        %2599 = vmatprep.subr.bf16.mxu0 0
        %2600 = vmatpush1.bf16.msra.mxu0 %v2534
        %2601 = vmatprep.subr.bf16.mxu0 0
        %2602 = vmatpush1.bf16.msra.mxu0 %v2535
        %2603 = vmatprep.subr.bf16.mxu0 0
        %2604 = vmatpush1.bf16.msra.mxu0 %v2536
        %2605 = vmatprep.subr.bf16.mxu0 0
        %2606 = vmatpush1.bf16.msra.mxu0 %v2537
        %2607 = vmatprep.subr.bf16.mxu0 0
        %2608 = vmatpush1.bf16.msra.mxu0 %v2538
        %2609 = vmatprep.subr.bf16.mxu0 0
        %2610 = vmatpush1.bf16.msra.mxu0 %v2539
        %2611 = vmatprep.subr.bf16.mxu0 0
        %2612 = vmatpush1.bf16.msra.mxu0 %v2540
        %2613 = vmatprep.subr.bf16.mxu0 0
        %2614 = vmatpush1.bf16.msra.mxu0 %v2541
        %2615 = vmatprep.subr.bf16.mxu0 0
        %2616 = vmatpush1.bf16.msra.mxu0 %v2542
        %2617 = vmatprep.subr.bf16.mxu0 0
        %2618 = vmatpush1.bf16.msra.mxu0 %v2543
        %2619 = vmatprep.subr.bf16.mxu0 0
        %2620 = vmatpush1.bf16.msra.mxu0 %v2544
        %2621 = vmatprep.mubr.bf16.mxu0 %v2391
        %2622 = vmatmul.mubr.bf16.gmra.mrb[0].mxu0 %v2327
        %v2623 = vpop.f32.mrb[0].mxu0
        %v2624 = vadd.f32 %v2455, %v2623
        %v2625 = vpop.f32.mrb[0].mxu0
        %v2626 = vpop.f32.mrb[0].mxu0
        %v2627 = vadd.f32 %v2455, %v2626
        %v2628 = vpop.f32.mrb[0].mxu0
        %2629 = vmatprep.mubr.bf16.mxu0 %v2394
        %2630 = vmatmul.mubr.bf16.gmra.mrb[0].mxu0 %v2330
        %v2631 = vpop.f32.mrb[0].mxu0
        %v2632 = vadd.f32 %v2455, %v2631
        %v2633 = vpop.f32.mrb[0].mxu0
        %v2634 = vpop.f32.mrb[0].mxu0
        %v2635 = vadd.f32 %v2455, %v2634
        %v2636 = vpop.f32.mrb[0].mxu0
        %2637 = vmatprep.mubr.bf16.mxu0 %v2397
        %2638 = vmatmul.mubr.bf16.gmra.mrb[0].mxu0 %v2333
        %v2639 = vpop.f32.mrb[0].mxu0
        %v2640 = vadd.f32 %v2455, %v2639
        %v2641 = vpop.f32.mrb[0].mxu0
        %v2642 = vpop.f32.mrb[0].mxu0
        %v2643 = vadd.f32 %v2455, %v2642
        %v2644 = vpop.f32.mrb[0].mxu0
        %2645 = vmatprep.mubr.bf16.mxu0 %v2400
        %2646 = vmatmul.mubr.bf16.gmra.mrb[0].mxu0 %v2336
        %v2647 = vpop.f32.mrb[0].mxu0
        %v2648 = vadd.f32 %v2455, %v2647
        %v2649 = vpop.f32.mrb[0].mxu0
        %v2650 = vpop.f32.mrb[0].mxu0
        %v2651 = vadd.f32 %v2455, %v2650
        %v2652 = vpop.f32.mrb[0].mxu0
        %2653 = vmatprep.mubr.bf16.mxu0 %v2403
        %2654 = vmatmul.mubr.bf16.gmra.mrb[0].mxu0 %v2339
        %v2655 = vpop.f32.mrb[0].mxu0
        %v2656 = vadd.f32 %v2455, %v2655
        %v2657 = vpop.f32.mrb[0].mxu0
        %v2658 = vpop.f32.mrb[0].mxu0
        %v2659 = vadd.f32 %v2455, %v2658
        %v2660 = vpop.f32.mrb[0].mxu0
        %2661 = vmatprep.mubr.bf16.mxu0 %v2406
        %2662 = vmatmul.mubr.bf16.gmra.mrb[0].mxu0 %v2342
        %v2663 = vpop.f32.mrb[0].mxu0
        %v2664 = vadd.f32 %v2455, %v2663
        %v2665 = vpop.f32.mrb[0].mxu0
        %v2666 = vpop.f32.mrb[0].mxu0
        %v2667 = vadd.f32 %v2455, %v2666
        %v2668 = vpop.f32.mrb[0].mxu0
        %2669 = vmatprep.mubr.bf16.mxu0 %v2409
        %2670 = vmatmul.mubr.bf16.gmra.mrb[0].mxu0 %v2345
        %v2671 = vpop.f32.mrb[0].mxu0
        %v2672 = vadd.f32 %v2455, %v2671
        %v2673 = vpop.f32.mrb[0].mxu0
        %v2674 = vpop.f32.mrb[0].mxu0
        %v2675 = vadd.f32 %v2455, %v2674
        %v2676 = vpop.f32.mrb[0].mxu0
        %2677 = vmatprep.mubr.bf16.mxu0 %v2412
        %2678 = vmatmul.mubr.bf16.gmra.mrb[0].mxu0 %v2348
        %v2679 = vpop.f32.mrb[0].mxu0
        %v2680 = vadd.f32 %v2455, %v2679
        %v2681 = vpop.f32.mrb[0].mxu0
        %v2682 = vpop.f32.mrb[0].mxu0
        %v2683 = vadd.f32 %v2455, %v2682
        %v2684 = vpop.f32.mrb[0].mxu0
        %2685 = vdwg.mxu0
        %2686 = vmatprep.subr.bf16.mxu0 0
        %2687 = vmatpush1.bf16.msra.mxu0 %v2545
        %2688 = vmatprep.subr.bf16.mxu0 0
        %2689 = vmatpush1.bf16.msra.mxu0 %v2546
        %2690 = vmatprep.subr.bf16.mxu0 0
        %2691 = vmatpush1.bf16.msra.mxu0 0
        %2692 = vmatprep.subr.bf16.mxu0 0
        %2693 = vmatpush1.bf16.msra.mxu0 0
        %2694 = vmatprep.subr.bf16.mxu0 0
        %2695 = vmatpush1.bf16.msra.mxu0 0
        %2696 = vmatprep.subr.bf16.mxu0 0
        %2697 = vmatpush1.bf16.msra.mxu0 0
        %2698 = vmatprep.subr.bf16.mxu0 0
        %2699 = vmatpush1.bf16.msra.mxu0 0
        %2700 = vmatprep.subr.bf16.mxu0 0
        %2701 = vmatpush1.bf16.msra.mxu0 0
        %2702 = vmatprep.subr.bf16.mxu0 0
        %2703 = vmatpush1.bf16.msra.mxu0 0
        %2704 = vmatprep.subr.bf16.mxu0 0
        %2705 = vmatpush1.bf16.msra.mxu0 0
        %2706 = vmatprep.subr.bf16.mxu0 0
        %2707 = vmatpush1.bf16.msra.mxu0 0
        %2708 = vmatprep.subr.bf16.mxu0 0
        %2709 = vmatpush1.bf16.msra.mxu0 0
        %2710 = vmatprep.subr.bf16.mxu0 0
        %2711 = vmatpush1.bf16.msra.mxu0 0
        %2712 = vmatprep.subr.bf16.mxu0 0
        %2713 = vmatpush1.bf16.msra.mxu0 0
        %2714 = vmatprep.subr.bf16.mxu0 0
        %2715 = vmatpush1.bf16.msra.mxu0 0
        %2716 = vmatprep.subr.bf16.mxu0 0
        %2717 = vmatpush1.bf16.msra.mxu0 0
        %2718 = vmatprep.mubr.bf16.mxu0 0
        %2719 = vmatmul.mubr.bf16.gmra.mrb[0].mxu0 %v2566
        %v2720 = vpop.f32.mrb[0].mxu0
        %v2721 = vadd.f32 %v2624, %v2720
        %v2722 = vpop.f32.mrb[0].mxu0
        %v2723 = vpop.f32.mrb[0].mxu0
        %v2724 = vadd.f32 %v2627, %v2723
        %v2725 = vpop.f32.mrb[0].mxu0
        %2726 = vmatprep.mubr.bf16.mxu0 0
        %2727 = vmatmul.mubr.bf16.gmra.mrb[0].mxu0 %v2569
        %v2728 = vpop.f32.mrb[0].mxu0
        %v2729 = vadd.f32 %v2632, %v2728
        %v2730 = vpop.f32.mrb[0].mxu0
        %v2731 = vpop.f32.mrb[0].mxu0
        %v2732 = vadd.f32 %v2635, %v2731
        %v2733 = vpop.f32.mrb[0].mxu0
        %2734 = vmatprep.mubr.bf16.mxu0 0
        %2735 = vmatmul.mubr.bf16.gmra.mrb[0].mxu0 %v2572
        %v2736 = vpop.f32.mrb[0].mxu0
        %v2737 = vadd.f32 %v2640, %v2736
        %v2738 = vpop.f32.mrb[0].mxu0
        %v2739 = vpop.f32.mrb[0].mxu0
        %v2740 = vadd.f32 %v2643, %v2739
        %v2741 = vpop.f32.mrb[0].mxu0
        %2742 = vmatprep.mubr.bf16.mxu0 0
        %2743 = vmatmul.mubr.bf16.gmra.mrb[0].mxu0 %v2575
        %v2744 = vpop.f32.mrb[0].mxu0
        %v2745 = vadd.f32 %v2648, %v2744
        %v2746 = vpop.f32.mrb[0].mxu0
        %v2747 = vpop.f32.mrb[0].mxu0
        %v2748 = vadd.f32 %v2651, %v2747
        %v2749 = vpop.f32.mrb[0].mxu0
        %2750 = vmatprep.mubr.bf16.mxu0 0
        %2751 = vmatmul.mubr.bf16.gmra.mrb[0].mxu0 %v2578
        %v2752 = vpop.f32.mrb[0].mxu0
        %v2753 = vadd.f32 %v2656, %v2752
        %v2754 = vpop.f32.mrb[0].mxu0
        %v2755 = vpop.f32.mrb[0].mxu0
        %v2756 = vadd.f32 %v2659, %v2755
        %v2757 = vpop.f32.mrb[0].mxu0
        %2758 = vmatprep.mubr.bf16.mxu0 0
        %2759 = vmatmul.mubr.bf16.gmra.mrb[0].mxu0 %v2581
        %v2760 = vpop.f32.mrb[0].mxu0
        %v2761 = vadd.f32 %v2664, %v2760
        %v2762 = vpop.f32.mrb[0].mxu0
        %v2763 = vpop.f32.mrb[0].mxu0
        %v2764 = vadd.f32 %v2667, %v2763
        %v2765 = vpop.f32.mrb[0].mxu0
        %2766 = vmatprep.mubr.bf16.mxu0 0
        %2767 = vmatmul.mubr.bf16.gmra.mrb[0].mxu0 %v2584
        %v2768 = vpop.f32.mrb[0].mxu0
        %v2769 = vadd.f32 %v2672, %v2768
        %v2770 = vpop.f32.mrb[0].mxu0
        %v2771 = vpop.f32.mrb[0].mxu0
        %v2772 = vadd.f32 %v2675, %v2771
        %v2773 = vpop.f32.mrb[0].mxu0
        %2774 = vmatprep.mubr.bf16.mxu0 0
        %2775 = vmatmul.mubr.bf16.gmra.mrb[0].mxu0 %v2587
        %v2776 = vpop.f32.mrb[0].mxu0
        %v2777 = vadd.f32 %v2680, %v2776
        %v2778 = vpop.f32.mrb[0].mxu0
        %v2779 = vpop.f32.mrb[0].mxu0
        %v2780 = vadd.f32 %v2683, %v2779
        %v2781 = vpop.f32.mrb[0].mxu0
        %2782 = vdwg.mxu0
        %v2783 = vmax.f32 %v2721, 0.0
        %v2784 = vmax.f32 %v2724, 0.0
        %v2785 = vmax.f32 %v2729, 0.0
        %v2786 = vmax.f32 %v2732, 0.0
        %v2787 = vmax.f32 %v2737, 0.0
        %v2788 = vmax.f32 %v2740, 0.0
        %v2789 = vmax.f32 %v2745, 0.0
        %v2790 = vmax.f32 %v2748, 0.0
        %v2791 = vmax.f32 %v2753, 0.0
        %v2792 = vmax.f32 %v2756, 0.0
        %v2793 = vmax.f32 %v2761, 0.0
        %v2794 = vmax.f32 %v2764, 0.0
        %v2795 = vmax.f32 %v2769, 0.0
        %v2796 = vmax.f32 %v2772, 0.0
        %v2797 = vmax.f32 %v2777, 0.0
        %v2798 = vmax.f32 %v2780, 0.0
        %v2799 = vsel %vm2308, %v2783, 0.0
        %v2800 = vsel %vm2308, %v2784, 0.0
        %v2801 = vadd.f32 %v2799, %v2800
        %v2802 = vrot.slane %v2801, 4
        %v2803 = vadd.f32 %v2801, %v2802
        %v2804 = vrot.slane %v2803, 2
        %v2805 = vadd.f32 %v2803, %v2804
        %v2806 = vrot.slane %v2805, 1
        %v2807 = vadd.f32 %v2805, %v2806
        %v2808 = vsel %vm2308, %v2785, 0.0
        %v2809 = vsel %vm2308, %v2786, 0.0
        %v2810 = vadd.f32 %v2808, %v2809
        %v2811 = vrot.slane %v2810, 4
        %v2812 = vadd.f32 %v2810, %v2811
        %v2813 = vrot.slane %v2812, 2
        %v2814 = vadd.f32 %v2812, %v2813
        %v2815 = vrot.slane %v2814, 1
        %v2816 = vadd.f32 %v2814, %v2815
        %v2817 = vsel %vm2308, %v2787, 0.0
        %v2818 = vsel %vm2308, %v2788, 0.0
        %v2819 = vadd.f32 %v2817, %v2818
        %v2820 = vrot.slane %v2819, 4
        %v2821 = vadd.f32 %v2819, %v2820
        %v2822 = vrot.slane %v2821, 2
        %v2823 = vadd.f32 %v2821, %v2822
        %v2824 = vrot.slane %v2823, 1
        %v2825 = vadd.f32 %v2823, %v2824
        %v2826 = vsel %vm2308, %v2789, 0.0
        %v2827 = vsel %vm2308, %v2790, 0.0
        %v2828 = vadd.f32 %v2826, %v2827
        %v2829 = vrot.slane %v2828, 4
        %v2830 = vadd.f32 %v2828, %v2829
        %v2831 = vrot.slane %v2830, 2
        %v2832 = vadd.f32 %v2830, %v2831
        %v2833 = vrot.slane %v2832, 1
        %v2834 = vadd.f32 %v2832, %v2833
        %v2835 = vsel %vm2308, %v2791, 0.0
        %v2836 = vsel %vm2308, %v2792, 0.0
        %v2837 = vadd.f32 %v2835, %v2836
        %v2838 = vrot.slane %v2837, 4
        %v2839 = vadd.f32 %v2837, %v2838
        %v2840 = vrot.slane %v2839, 2
        %v2841 = vadd.f32 %v2839, %v2840
        %v2842 = vrot.slane %v2841, 1
        %v2843 = vadd.f32 %v2841, %v2842
        %v2844 = vsel %vm2308, %v2793, 0.0
        %v2845 = vsel %vm2308, %v2794, 0.0
        %v2846 = vadd.f32 %v2844, %v2845
        %v2847 = vrot.slane %v2846, 4
        %v2848 = vadd.f32 %v2846, %v2847
        %v2849 = vrot.slane %v2848, 2
        %v2850 = vadd.f32 %v2848, %v2849
        %v2851 = vrot.slane %v2850, 1
        %v2852 = vadd.f32 %v2850, %v2851
        %v2853 = vsel %vm2308, %v2795, 0.0
        %v2854 = vsel %vm2308, %v2796, 0.0
        %v2855 = vadd.f32 %v2853, %v2854
        %v2856 = vrot.slane %v2855, 4
        %v2857 = vadd.f32 %v2855, %v2856
        %v2858 = vrot.slane %v2857, 2
        %v2859 = vadd.f32 %v2857, %v2858
        %v2860 = vrot.slane %v2859, 1
        %v2861 = vadd.f32 %v2859, %v2860
        %v2862 = vsel %vm2308, %v2797, 0.0
        %v2863 = vsel %vm2308, %v2798, 0.0
        %v2864 = vadd.f32 %v2862, %v2863
        %v2865 = vrot.slane %v2864, 4
        %v2866 = vadd.f32 %v2864, %v2865
        %v2867 = vrot.slane %v2866, 2
        %v2868 = vadd.f32 %v2866, %v2867
        %v2869 = vrot.slane %v2868, 1
        %v2870 = vadd.f32 %v2868, %v2869
        %v2871 = vld [vmem:[%s5] sm:$0xff]
        %v2872 = vld [vmem:[%s5 + $0x8] sm:$0xff]
        %v2873 = vld [vmem:[%s5 + $0x10] sm:$0xff]
        %v2874 = vld [vmem:[%s5 + $0x18] sm:$0xff]
        %v2875 = vld [vmem:[%s5 + $0x20] sm:$0xff]
        %v2876 = vld [vmem:[%s5 + $0x28] sm:$0xff]
        %v2877 = vld [vmem:[%s5 + $0x30] sm:$0xff]
        %v2878 = vld [vmem:[%s5 + $0x38] sm:$0xff]
        %v2879 = vld [vmem:[%s6] sm:$0x1]
        %v2881 = vlaneseq
        %v2882 = vshrl.u32 %v2881, 7
        %v2883 = vsub.s32 0, %v2882
        %v2884 = vrot.slane %v2879, %v2883
        %vm2894 = vcmask 1041409
        %v2895 = vsel %vm2894, %v2816, %v2807
        %vm2896 = vcmask 1042434
        %v2897 = vsel %vm2896, %v2825, %v2895
        %vm2898 = vcmask 1043459
        %v2899 = vsel %vm2898, %v2834, %v2897
        %vm2900 = vcmask 1044484
        %v2901 = vsel %vm2900, %v2843, %v2899
        %vm2902 = vcmask 1045509
        %v2903 = vsel %vm2902, %v2852, %v2901
        %vm2904 = vcmask 1046534
        %v2905 = vsel %vm2904, %v2861, %v2903
        %vm2906 = vcmask 1047559
        %v2907 = vsel %vm2906, %v2870, %v2905
        %v2908 = vsel %vm2308, %v2907, 0
        %2910 = vmatprep.subr.mxu0 0.0
        %2911 = vmatpush1.msra.mxu0 %v2871
        %2912 = vmatprep.subr.mxu0 0.0
        %2913 = vmatpush1.msra.mxu0 %v2872
        %2914 = vmatprep.subr.mxu0 0.0
        %2915 = vmatpush1.msra.mxu0 %v2873
        %2916 = vmatprep.subr.mxu0 0.0
        %2917 = vmatpush1.msra.mxu0 %v2874
        %2918 = vmatprep.subr.mxu0 0.0
        %2919 = vmatpush1.msra.mxu0 %v2875
        %2920 = vmatprep.subr.mxu0 0.0
        %2921 = vmatpush1.msra.mxu0 %v2876
        %2922 = vmatprep.subr.mxu0 0.0
        %2923 = vmatpush1.msra.mxu0 %v2877
        %2924 = vmatprep.subr.mxu0 0.0
        %2925 = vmatpush1.msra.mxu0 %v2878
        %2926 = vmatprep.subr.mxu0 0.0
        %2927 = vmatpush1.msra.mxu0 0.0
        %2928 = vmatprep.subr.mxu0 0.0
        %2929 = vmatpush1.msra.mxu0 0.0
        %2930 = vmatprep.subr.mxu0 0.0
        %2931 = vmatpush1.msra.mxu0 0.0
        %2932 = vmatprep.subr.mxu0 0.0
        %2933 = vmatpush1.msra.mxu0 0.0
        %2934 = vmatprep.subr.mxu0 0.0
        %2935 = vmatpush1.msra.mxu0 0.0
        %2936 = vmatprep.subr.mxu0 0.0
        %2937 = vmatpush1.msra.mxu0 0.0
        %2938 = vmatprep.subr.mxu0 0.0
        %2939 = vmatpush1.msra.mxu0 0.0
        %2940 = vmatprep.subr.mxu0 0.0
        %2941 = vmatpush1.msra.mxu0 0.0
        %2942 = vmatprep.subr.mxu0 0.0
        %2943 = vmatpush1.msra.mxu0 0.0
        %2944 = vmatprep.subr.mxu0 0.0
        %2945 = vmatpush1.msra.mxu0 0.0
        %2946 = vmatprep.subr.mxu0 0.0
        %2947 = vmatpush1.msra.mxu0 0.0
        %2948 = vmatprep.subr.mxu0 0.0
        %2949 = vmatpush1.msra.mxu0 0.0
        %2950 = vmatprep.subr.mxu0 0.0
        %2951 = vmatpush1.msra.mxu0 0.0
        %2952 = vmatprep.subr.mxu0 0.0
        %2953 = vmatpush1.msra.mxu0 0.0
        %2954 = vmatprep.subr.mxu0 0.0
        %2955 = vmatpush1.msra.mxu0 0.0
        %2956 = vmatprep.subr.mxu0 0.0
        %2957 = vmatpush1.msra.mxu0 0.0
        %2958 = vmatprep.subr.mxu0 0.0
        %2959 = vmatpush1.msra.mxu0 0.0
        %2960 = vmatprep.subr.mxu0 0.0
        %2961 = vmatpush1.msra.mxu0 0.0
        %2962 = vmatprep.subr.mxu0 0.0
        %2963 = vmatpush1.msra.mxu0 0.0
        %2964 = vmatprep.subr.mxu0 0.0
        %2965 = vmatpush1.msra.mxu0 0.0
        %2966 = vmatprep.subr.mxu0 0.0
        %2967 = vmatpush1.msra.mxu0 0.0
        %2968 = vmatprep.subr.mxu0 0.0
        %2969 = vmatpush1.msra.mxu0 0.0
        %2970 = vmatprep.subr.mxu0 0.0
        %2971 = vmatpush1.msra.mxu0 0.0
        %2972 = vmatprep.subr.mxu0 0.0
        %2973 = vmatpush1.msra.mxu0 0.0
        %2974 = vmatprep.mubr.f32.mxu0 0.0
        %2975 = vmatmul.mubr.f32.gmra.mrb[0].mxu0 %v2908
        %v2976 = vpop.f32.mrb[0].mxu0
        %v2977 = vadd.f32 %v2884, %v2976
        %v2978 = vpop.f32.mrb[0].mxu0
        %2979 = vdwg.mxu0
        %2980 = vst.msk [vmem:[%s295] sm:$0xff] %vm2291, %v2977
        %s2981 = sand.u32 %s197, 1
        %s2982 = scalar_lea.sflag [#allocation4], %s2981
        %s2983 = sand.u32 %s197, 1
        %s2984 = smul.addr %s2983, 8
        %s2985 = scalar_lea.vmem [#allocation3], %s2984
        // Predicated region
        $region53: #{tpu_custom_call.1} parent=47 // pred_check
          %p2986 = pneg %p207
        $region54: #{tpu_custom_call.1} parent=47 // pred_check_branch
          %2988 = sbr.rel (%p2986) target = $region56
        $region55: #{tpu_custom_call.1} parent=47 // pred_region
          %s2990 = ssub.s32 128, 128
          %2991 = vsyncadd %s2982, %s2990
          %s2992 = sadd.s32 %s26, %s25
          %s2993 = smul.addr %s2992, 128
          %s2994 = scalar_lea.hbm %s7, %s2993
          %s2996 = sshll.u32 %s2985, 4
          %s2997 = int_to_ptr.vmem [resolvable:$true] %s2996
          %2999 = dma.vmem_to_hbm [thread:$0]  %s2997, 128, %s2994, %s2982
        $region56: #{tpu_custom_call.1} parent=47 // pred_fallthru
          _
      $region48: #{tpu_custom_call.1} parent=5 // pred_fallthru
        _
      %p3000 = scmp.le.s32.totalorder 2, %s16
      // Predicated region
      $region57: #{tpu_custom_call.1} parent=5 // pred_check
        %p3001 = pneg %p3000
      $region58: #{tpu_custom_call.1} parent=5 // pred_check_branch
        %3003 = sbr.rel (%p3001) target = $region60
      $region59: #{tpu_custom_call.1} parent=5 // pred_region
        %s3004 = ssub.s32 %s16, 2
        // Predicated region
        $region61: #{tpu_custom_call.1} parent=59 // pred_check
          %p3005 = pneg %p213
        $region62: #{tpu_custom_call.1} parent=59 // pred_check_branch
          %3007 = sbr.rel (%p3005) target = $region64
        $region63: #{tpu_custom_call.1} parent=59 // pred_region
          %s3008 = sand.u32 %s198, 1
          %s3009 = scalar_lea.sflag [#allocation4], %s3008
          %s3010 = sand.u32 %s198, 1
          %s3011 = smul.addr %s3010, 8
          %s3012 = scalar_lea.vmem [#allocation3], %s3011
          %3013 = dma.done %s3009, 128
        $region64: #{tpu_custom_call.1} parent=59 // pred_fallthru
          _
      $region60: #{tpu_custom_call.1} parent=5 // pred_fallthru
        _
    $region6: #{tpu_custom_call.1} parent=1 // loop_footer
      %s20 = sadd.s32 1, %s16
    $region7: #{tpu_custom_call.1} parent=1 // loop_footer_branch
      %15 = sbr.rel target = $region3
    $region8: #{tpu_custom_call.1} parent=1 // loop_exit
      _
    %3014 = vsyncpa [#allocation4], 1
    %s3015 = scalar_lea.sflag [#allocation4], 1
    %3016 = vsyncpa %s3015, 1

</llo_original>
